<compile_context>
chip_gen: v5e
topology: v5e:2x2
jax: 0.10.0
libtpu: 0.0.40
codegen_flags: <defaults>
</compile_context>

<pallas_src>
import jax
import jax.numpy as jnp
from jax.experimental import pallas as pl
from jax.experimental.pallas import tpu as pltpu


def irnn_kernel(x_ref, p_ref, up_ref, right_ref, down_ref, left_ref):
    # x_ref: (1, H, W, Cblk) f32 — H untiled, W on sublanes, C on lanes.
    # p_ref: (8, Cblk) rows = [wl, bl, wr, br, wu, bu, wd, bd].
    x = x_ref[0]                                   # (H, W, Cblk)

    # ---- up:    out[1:, :, :] = relu(wu*x[:-1] + bu + x[1:]) ----
    wu = p_ref[4, :]
    bu = p_ref[5, :]
    up_body = jnp.maximum(wu * x[:-1] + bu + x[1:], 0.0)
    up_ref[0] = jnp.concatenate([x[:1], up_body], axis=0).astype(up_ref.dtype)

    # ---- down:  out[:-1, :, :] = relu(wd*x[1:] + bd + x[:-1]) ----
    wd = p_ref[6, :]
    bd = p_ref[7, :]
    down_body = jnp.maximum(wd * x[1:] + bd + x[:-1], 0.0)
    down_ref[0] = jnp.concatenate([down_body, x[-1:]], axis=0).astype(down_ref.dtype)

    # ---- left:  out[:, 1:, :] = relu(wl*x[:, :-1] + bl + x[:, 1:]) ----
    wl = p_ref[0, :]
    bl = p_ref[1, :]
    left_body = jnp.maximum(wl * x[:, :-1] + bl + x[:, 1:], 0.0)
    left_ref[0] = jnp.concatenate([x[:, :1], left_body], axis=1).astype(left_ref.dtype)

    # ---- right: out[:, :-1, :] = relu(wr*x[:, 1:] + br + x[:, :-1]) ----
    wr = p_ref[2, :]
    br = p_ref[3, :]
    right_body = jnp.maximum(wr * x[:, 1:] + br + x[:, :-1], 0.0)
    right_ref[0] = jnp.concatenate([right_body, x[:, -1:]], axis=1).astype(right_ref.dtype)


def _pick_c_block(C, H, W, elem_bytes=4, target_bytes=2 * 1024 * 1024):
    """Largest C tile that (a) keeps the lane dim 128-aligned or full, and
    (b) keeps one (H, W, Cblk) f32 block around ~2 MiB (so 1 input + 4 outputs,
    double-buffered, stay well inside v7x's 64 MiB VMEM)."""
    if C % 128 != 0:
        return C  # lane dim must equal the full array dim when not 128-aligned
    candidates = [tc for tc in range(128, C + 1, 128) if C % tc == 0]
    fitting = [tc for tc in candidates if H * W * tc * elem_bytes <= target_bytes]
    return max(fitting) if fitting else min(candidates)


def irnn_layer_pallas(x, params):
    """x: (N, C, H, W) float32 (PyTorch layout).
    params: dict of (w, b) per direction ('left','right','up','down'), each (C,).
    Returns (top_up, top_right, top_down, top_left) in NCHW, float32."""
    N, C, H, W = x.shape

    # NHWC so C sits on the lane axis inside the kernel (lane-dense stores).
    xt = jnp.transpose(x, (0, 2, 3, 1)).astype(jnp.float32)   # (N, H, W, C)

    wl, bl = params["left"]
    wr, br = params["right"]
    wu, bu = params["up"]
    wd, bd = params["down"]
    p = jnp.stack([wl, bl, wr, br, wu, bu, wd, bd], axis=0).astype(jnp.float32)  # (8, C)

    TC = _pick_c_block(C, H, W)
    grid = (N, C // TC)

    blk = pl.BlockSpec((1, H, W, TC), lambda n, c: (n, 0, 0, c))
    p_spec = pl.BlockSpec((8, TC), lambda n, c: (0, c))
    out_shape = jax.ShapeDtypeStruct((N, H, W, C), jnp.float32)

    elems = N * C * H * W
    cost = pl.CostEstimate(
        flops=16 * elems,                       # ~4 VPU ops/elem x 4 directions
        transcendentals=0,
        bytes_accessed=5 * elems * 4 + 8 * C * 4,  # 1 read + 4 writes + params
    )

    up, right, down, left = pl.pallas_call(
        irnn_kernel,
        grid=grid,
        in_specs=[blk, p_spec],
        out_specs=(blk, blk, blk, blk),
        out_shape=(out_shape, out_shape, out_shape, out_shape),
        compiler_params=pltpu.CompilerParams(
            dimension_semantics=("parallel", "parallel")),
        cost_estimate=cost,
    )(xt, p)

    to_nchw = lambda t: jnp.transpose(t, (0, 3, 1, 2))
    return to_nchw(up), to_nchw(right), to_nchw(down), to_nchw(left)


def irnn_layer_ref(x, params):
    """Pure-JAX reference mirroring the PyTorch forward (correctness check)."""
    N, C, H, W = x.shape

    def conv(wb):
        w, b = wb
        return x * w.reshape(1, C, 1, 1) + b.reshape(1, C, 1, 1)

    lx = conv(params["left"])
    rx = conv(params["right"])
    ux = conv(params["up"])
    dx = conv(params["down"])

    top_left = x.at[:, :, :, 1:].set(
        jax.nn.relu(lx[:, :, :, :W - 1] + x[:, :, :, 1:]))
    top_right = x.at[:, :, :, :-1].set(
        jax.nn.relu(rx[:, :, :, 1:] + x[:, :, :, :W - 1]))
    top_up = x.at[:, :, 1:, :].set(
        jax.nn.relu(ux[:, :, :H - 1, :] + x[:, :, 1:, :]))
    top_down = x.at[:, :, :-1, :].set(
        jax.nn.relu(dx[:, :, 1:, :] + x[:, :, :H - 1, :]))
    return top_up, top_right, top_down, top_left


if __name__ == "__main__":
    N, C, H, W = 2, 4, 16, 16
    key = jax.random.PRNGKey(0)
    kx, *kp = jax.random.split(key, 9)

    x = jax.random.normal(kx, (N, C, H, W), dtype=jnp.float32)

    # Per-channel conv params (PyTorch weight shape (C,1,1,1) -> (C,), bias (C,)).
    params = {
        "left":  (jax.random.normal(kp[0], (C,), jnp.float32) * 0.5,
                  jax.random.normal(kp[1], (C,), jnp.float32) * 0.1),
        "right": (jax.random.normal(kp[2], (C,), jnp.float32) * 0.5,
                  jax.random.normal(kp[3], (C,), jnp.float32) * 0.1),
        "up":    (jax.random.normal(kp[4], (C,), jnp.float32) * 0.5,
                  jax.random.normal(kp[5], (C,), jnp.float32) * 0.1),
        "down":  (jax.random.normal(kp[6], (C,), jnp.float32) * 0.5,
                  jax.random.normal(kp[7], (C,), jnp.float32) * 0.1),
    }

    outs = irnn_layer_pallas(x, params)
    outs = jax.block_until_ready(outs)

    refs = irnn_layer_ref(x, params)
    for o, r in zip(outs, refs):
        assert o.shape == (N, C, H, W) and o.dtype == jnp.float32
        assert jnp.allclose(o, r, atol=1e-5, rtol=1e-5)

    print("KERNEL_OK")
</pallas_src>

<mosaic_0001>
module attributes {stable_mosaic.version = 11 : i64} {
  func.func @irnn_kernel(%arg0: i32, %arg1: i32, %arg2: memref<1x16x16x4xf32, #tpu.memory_space<vmem>>, %arg3: memref<8x4xf32, #tpu.memory_space<vmem>>, %arg4: memref<1x16x16x4xf32, #tpu.memory_space<vmem>>, %arg5: memref<1x16x16x4xf32, #tpu.memory_space<vmem>>, %arg6: memref<1x16x16x4xf32, #tpu.memory_space<vmem>>, %arg7: memref<1x16x16x4xf32, #tpu.memory_space<vmem>>) attributes {dimension_semantics = [#tpu.dimension_semantics<parallel>, #tpu.dimension_semantics<parallel>], iteration_bounds = array<i64: 2, 1>, scalar_prefetch = 0 : i64, scratch_operands = 0 : i64, tpu.core_type = #tpu.core_type<tc>, window_params = [{transform_indices = @transform_0, window_bounds = array<i64: 1, 16, 16, 4>}, {transform_indices = @transform_1, window_bounds = array<i64: 8, 4>}, {transform_indices = @transform_2, window_bounds = array<i64: 1, 16, 16, 4>}, {transform_indices = @transform_3, window_bounds = array<i64: 1, 16, 16, 4>}, {transform_indices = @transform_4, window_bounds = array<i64: 1, 16, 16, 4>}, {transform_indices = @transform_5, window_bounds = array<i64: 1, 16, 16, 4>}]} {
    %c0 = arith.constant 0 : index
    %c0_0 = arith.constant 0 : index
    %c0_1 = arith.constant 0 : index
    %c0_2 = arith.constant 0 : index
    %0 = vector.load %arg2[%c0, %c0_0, %c0_1, %c0_2] : memref<1x16x16x4xf32, #tpu.memory_space<vmem>>, vector<1x16x16x4xf32>
    %1 = vector.shape_cast %0 : vector<1x16x16x4xf32> to vector<16x16x4xf32>
    %c4 = arith.constant 4 : index
    %c0_3 = arith.constant 0 : index
    %2 = vector.load %arg3[%c4, %c0_3] : memref<8x4xf32, #tpu.memory_space<vmem>>, vector<1x4xf32>
    %3 = vector.shape_cast %2 : vector<1x4xf32> to vector<4xf32>
    %c5 = arith.constant 5 : index
    %c0_4 = arith.constant 0 : index
    %4 = vector.load %arg3[%c5, %c0_4] : memref<8x4xf32, #tpu.memory_space<vmem>>, vector<1x4xf32>
    %5 = vector.shape_cast %4 : vector<1x4xf32> to vector<4xf32>
    %6 = vector.extract_strided_slice %1 {offsets = [0, 0, 0], sizes = [15, 16, 4], strides = [1, 1, 1]} : vector<16x16x4xf32> to vector<15x16x4xf32>
    %7 = vector.shape_cast %3 : vector<4xf32> to vector<1x1x4xf32>
    %8 = vector.broadcast %7 : vector<1x1x4xf32> to vector<15x16x4xf32>
    %9 = arith.mulf %8, %6 : vector<15x16x4xf32>
    %10 = vector.shape_cast %5 : vector<4xf32> to vector<1x1x4xf32>
    %11 = vector.broadcast %10 : vector<1x1x4xf32> to vector<15x16x4xf32>
    %12 = arith.addf %9, %11 : vector<15x16x4xf32>
    %13 = vector.extract_strided_slice %1 {offsets = [1, 0, 0], sizes = [15, 16, 4], strides = [1, 1, 1]} : vector<16x16x4xf32> to vector<15x16x4xf32>
    %14 = arith.addf %12, %13 : vector<15x16x4xf32>
    %cst = arith.constant 0.000000e+00 : f32
    %15 = vector.broadcast %cst : f32 to vector<15x16x4xf32>
    %16 = arith.maximumf %14, %15 : vector<15x16x4xf32>
    %17 = vector.extract_strided_slice %1 {offsets = [0, 0, 0], sizes = [1, 16, 4], strides = [1, 1, 1]} : vector<16x16x4xf32> to vector<1x16x4xf32>
    %18 = tpu.concatenate %17, %16 in 0 : vector<1x16x4xf32>, vector<15x16x4xf32> -> vector<16x16x4xf32>
    %c0_5 = arith.constant 0 : index
    %c0_6 = arith.constant 0 : index
    %c0_7 = arith.constant 0 : index
    %c0_8 = arith.constant 0 : index
    %19 = vector.load %arg4[%c0_5, %c0_6, %c0_7, %c0_8] : memref<1x16x16x4xf32, #tpu.memory_space<vmem>>, vector<1x16x16x4xf32>
    %20 = vector.shape_cast %19 : vector<1x16x16x4xf32> to vector<16x16x4xf32>
    %21 = vector.shape_cast %18 : vector<16x16x4xf32> to vector<1x16x16x4xf32>
    tpu.vector_store %arg4[%c0_5, %c0_6, %c0_7, %c0_8], %21 {strides = array<i32>} : memref<1x16x16x4xf32, #tpu.memory_space<vmem>>, vector<1x16x16x4xf32>,
    %c6 = arith.constant 6 : index
    %c0_9 = arith.constant 0 : index
    %22 = vector.load %arg3[%c6, %c0_9] : memref<8x4xf32, #tpu.memory_space<vmem>>, vector<1x4xf32>
    %23 = vector.shape_cast %22 : vector<1x4xf32> to vector<4xf32>
    %c7 = arith.constant 7 : index
    %c0_10 = arith.constant 0 : index
    %24 = vector.load %arg3[%c7, %c0_10] : memref<8x4xf32, #tpu.memory_space<vmem>>, vector<1x4xf32>
    %25 = vector.shape_cast %24 : vector<1x4xf32> to vector<4xf32>
    %26 = vector.extract_strided_slice %1 {offsets = [1, 0, 0], sizes = [15, 16, 4], strides = [1, 1, 1]} : vector<16x16x4xf32> to vector<15x16x4xf32>
    %27 = vector.shape_cast %23 : vector<4xf32> to vector<1x1x4xf32>
    %28 = vector.broadcast %27 : vector<1x1x4xf32> to vector<15x16x4xf32>
    %29 = arith.mulf %28, %26 : vector<15x16x4xf32>
    %30 = vector.shape_cast %25 : vector<4xf32> to vector<1x1x4xf32>
    %31 = vector.broadcast %30 : vector<1x1x4xf32> to vector<15x16x4xf32>
    %32 = arith.addf %29, %31 : vector<15x16x4xf32>
    %33 = vector.extract_strided_slice %1 {offsets = [0, 0, 0], sizes = [15, 16, 4], strides = [1, 1, 1]} : vector<16x16x4xf32> to vector<15x16x4xf32>
    %34 = arith.addf %32, %33 : vector<15x16x4xf32>
    %cst_11 = arith.constant 0.000000e+00 : f32
    %35 = vector.broadcast %cst_11 : f32 to vector<15x16x4xf32>
    %36 = arith.maximumf %34, %35 : vector<15x16x4xf32>
    %37 = vector.extract_strided_slice %1 {offsets = [15, 0, 0], sizes = [1, 16, 4], strides = [1, 1, 1]} : vector<16x16x4xf32> to vector<1x16x4xf32>
    %38 = tpu.concatenate %36, %37 in 0 : vector<15x16x4xf32>, vector<1x16x4xf32> -> vector<16x16x4xf32>
    %c0_12 = arith.constant 0 : index
    %c0_13 = arith.constant 0 : index
    %c0_14 = arith.constant 0 : index
    %c0_15 = arith.constant 0 : index
    %39 = vector.load %arg6[%c0_12, %c0_13, %c0_14, %c0_15] : memref<1x16x16x4xf32, #tpu.memory_space<vmem>>, vector<1x16x16x4xf32>
    %40 = vector.shape_cast %39 : vector<1x16x16x4xf32> to vector<16x16x4xf32>
    %41 = vector.shape_cast %38 : vector<16x16x4xf32> to vector<1x16x16x4xf32>
    tpu.vector_store %arg6[%c0_12, %c0_13, %c0_14, %c0_15], %41 {strides = array<i32>} : memref<1x16x16x4xf32, #tpu.memory_space<vmem>>, vector<1x16x16x4xf32>,
    %c0_16 = arith.constant 0 : index
    %c0_17 = arith.constant 0 : index
    %42 = vector.load %arg3[%c0_16, %c0_17] : memref<8x4xf32, #tpu.memory_space<vmem>>, vector<1x4xf32>
    %43 = vector.shape_cast %42 : vector<1x4xf32> to vector<4xf32>
    %c1 = arith.constant 1 : index
    %c0_18 = arith.constant 0 : index
    %44 = vector.load %arg3[%c1, %c0_18] : memref<8x4xf32, #tpu.memory_space<vmem>>, vector<1x4xf32>
    %45 = vector.shape_cast %44 : vector<1x4xf32> to vector<4xf32>
    %46 = vector.extract_strided_slice %1 {offsets = [0, 0, 0], sizes = [16, 15, 4], strides = [1, 1, 1]} : vector<16x16x4xf32> to vector<16x15x4xf32>
    %47 = vector.shape_cast %43 : vector<4xf32> to vector<1x1x4xf32>
    %48 = vector.broadcast %47 : vector<1x1x4xf32> to vector<16x15x4xf32>
    %49 = arith.mulf %48, %46 : vector<16x15x4xf32>
    %50 = vector.shape_cast %45 : vector<4xf32> to vector<1x1x4xf32>
    %51 = vector.broadcast %50 : vector<1x1x4xf32> to vector<16x15x4xf32>
    %52 = arith.addf %49, %51 : vector<16x15x4xf32>
    %53 = vector.extract_strided_slice %1 {offsets = [0, 1, 0], sizes = [16, 15, 4], strides = [1, 1, 1]} : vector<16x16x4xf32> to vector<16x15x4xf32>
    %54 = arith.addf %52, %53 : vector<16x15x4xf32>
    %cst_19 = arith.constant 0.000000e+00 : f32
    %55 = vector.broadcast %cst_19 : f32 to vector<16x15x4xf32>
    %56 = arith.maximumf %54, %55 : vector<16x15x4xf32>
    %57 = vector.extract_strided_slice %1 {offsets = [0, 0, 0], sizes = [16, 1, 4], strides = [1, 1, 1]} : vector<16x16x4xf32> to vector<16x1x4xf32>
    %58 = tpu.concatenate %57, %56 in 1 : vector<16x1x4xf32>, vector<16x15x4xf32> -> vector<16x16x4xf32>
    %c0_20 = arith.constant 0 : index
    %c0_21 = arith.constant 0 : index
    %c0_22 = arith.constant 0 : index
    %c0_23 = arith.constant 0 : index
    %59 = vector.load %arg7[%c0_20, %c0_21, %c0_22, %c0_23] : memref<1x16x16x4xf32, #tpu.memory_space<vmem>>, vector<1x16x16x4xf32>
    %60 = vector.shape_cast %59 : vector<1x16x16x4xf32> to vector<16x16x4xf32>
    %61 = vector.shape_cast %58 : vector<16x16x4xf32> to vector<1x16x16x4xf32>
    tpu.vector_store %arg7[%c0_20, %c0_21, %c0_22, %c0_23], %61 {strides = array<i32>} : memref<1x16x16x4xf32, #tpu.memory_space<vmem>>, vector<1x16x16x4xf32>,
    %c2 = arith.constant 2 : index
    %c0_24 = arith.constant 0 : index
    %62 = vector.load %arg3[%c2, %c0_24] : memref<8x4xf32, #tpu.memory_space<vmem>>, vector<1x4xf32>
    %63 = vector.shape_cast %62 : vector<1x4xf32> to vector<4xf32>
    %c3 = arith.constant 3 : index
    %c0_25 = arith.constant 0 : index
    %64 = vector.load %arg3[%c3, %c0_25] : memref<8x4xf32, #tpu.memory_space<vmem>>, vector<1x4xf32>
    %65 = vector.shape_cast %64 : vector<1x4xf32> to vector<4xf32>
    %66 = vector.extract_strided_slice %1 {offsets = [0, 1, 0], sizes = [16, 15, 4], strides = [1, 1, 1]} : vector<16x16x4xf32> to vector<16x15x4xf32>
    %67 = vector.shape_cast %63 : vector<4xf32> to vector<1x1x4xf32>
    %68 = vector.broadcast %67 : vector<1x1x4xf32> to vector<16x15x4xf32>
    %69 = arith.mulf %68, %66 : vector<16x15x4xf32>
    %70 = vector.shape_cast %65 : vector<4xf32> to vector<1x1x4xf32>
    %71 = vector.broadcast %70 : vector<1x1x4xf32> to vector<16x15x4xf32>
    %72 = arith.addf %69, %71 : vector<16x15x4xf32>
    %73 = vector.extract_strided_slice %1 {offsets = [0, 0, 0], sizes = [16, 15, 4], strides = [1, 1, 1]} : vector<16x16x4xf32> to vector<16x15x4xf32>
    %74 = arith.addf %72, %73 : vector<16x15x4xf32>
    %cst_26 = arith.constant 0.000000e+00 : f32
    %75 = vector.broadcast %cst_26 : f32 to vector<16x15x4xf32>
    %76 = arith.maximumf %74, %75 : vector<16x15x4xf32>
    %77 = vector.extract_strided_slice %1 {offsets = [0, 15, 0], sizes = [16, 1, 4], strides = [1, 1, 1]} : vector<16x16x4xf32> to vector<16x1x4xf32>
    %78 = tpu.concatenate %76, %77 in 1 : vector<16x15x4xf32>, vector<16x1x4xf32> -> vector<16x16x4xf32>
    %c0_27 = arith.constant 0 : index
    %c0_28 = arith.constant 0 : index
    %c0_29 = arith.constant 0 : index
    %c0_30 = arith.constant 0 : index
    %79 = vector.load %arg5[%c0_27, %c0_28, %c0_29, %c0_30] : memref<1x16x16x4xf32, #tpu.memory_space<vmem>>, vector<1x16x16x4xf32>
    %80 = vector.shape_cast %79 : vector<1x16x16x4xf32> to vector<16x16x4xf32>
    %81 = vector.shape_cast %78 : vector<16x16x4xf32> to vector<1x16x16x4xf32>
    tpu.vector_store %arg5[%c0_27, %c0_28, %c0_29, %c0_30], %81 {strides = array<i32>} : memref<1x16x16x4xf32, #tpu.memory_space<vmem>>, vector<1x16x16x4xf32>,
    return
  }
  func.func @transform_0(%arg0: i32, %arg1: i32) -> (i32, i32, i32, i32) {
    %c0_i32 = arith.constant 0 : i32
    %c0_i32_0 = arith.constant 0 : i32
    %c0_i32_1 = arith.constant 0 : i32
    return %arg0, %c0_i32, %c0_i32_0, %arg1 : i32, i32, i32, i32
  }
  func.func @transform_1(%arg0: i32, %arg1: i32) -> (i32, i32) {
    %c0_i32 = arith.constant 0 : i32
    %c0_i32_0 = arith.constant 0 : i32
    return %c0_i32, %arg1 : i32, i32
  }
  func.func @transform_2(%arg0: i32, %arg1: i32) -> (i32, i32, i32, i32) {
    %c0_i32 = arith.constant 0 : i32
    %c0_i32_0 = arith.constant 0 : i32
    %c0_i32_1 = arith.constant 0 : i32
    return %arg0, %c0_i32, %c0_i32_0, %arg1 : i32, i32, i32, i32
  }
  func.func @transform_3(%arg0: i32, %arg1: i32) -> (i32, i32, i32, i32) {
    %c0_i32 = arith.constant 0 : i32
    %c0_i32_0 = arith.constant 0 : i32
    %c0_i32_1 = arith.constant 0 : i32
    return %arg0, %c0_i32, %c0_i32_0, %arg1 : i32, i32, i32, i32
  }
  func.func @transform_4(%arg0: i32, %arg1: i32) -> (i32, i32, i32, i32) {
    %c0_i32 = arith.constant 0 : i32
    %c0_i32_0 = arith.constant 0 : i32
    %c0_i32_1 = arith.constant 0 : i32
    return %arg0, %c0_i32, %c0_i32_0, %arg1 : i32, i32, i32, i32
  }
  func.func @transform_5(%arg0: i32, %arg1: i32) -> (i32, i32, i32, i32) {
    %c0_i32 = arith.constant 0 : i32
    %c0_i32_0 = arith.constant 0 : i32
    %c0_i32_1 = arith.constant 0 : i32
    return %arg0, %c0_i32, %c0_i32_0, %arg1 : i32, i32, i32, i32
  }
}

</mosaic_0001>

<llo_original>
// kernel: tpu_custom_call.1
$region0: #{tpu_custom_call.1}
  #allocation0 [shape = 'u32[]', space=smem, size = 0x4, offset = 0x4, fixed_abs, tag = 'smem constant byte address 0x4 - core index']
  #allocation1 [shape = 'u32[72,128]{1,0:T(1,128)}', space=vmem, size = 0x9000, scoped, tag = 'internal scratch']
  %s0 = inlined_call_operand.vmem [shape: f32[2,16,16,4], index: 0, kind: input, shape index: {}]
  %s1 = inlined_call_operand.vmem [shape: f32[8,4], index: 1, kind: input, shape index: {}]
  %s2 = inlined_call_operand.vmem [shape: f32[2,16,16,4], index: 2, kind: output, shape index: {0}]
  %s3 = inlined_call_operand.vmem [shape: f32[2,16,16,4], index: 3, kind: output, shape index: {1}]
  %s4 = inlined_call_operand.vmem [shape: f32[2,16,16,4], index: 4, kind: output, shape index: {2}]
  %s5 = inlined_call_operand.vmem [shape: f32[2,16,16,4], index: 5, kind: output, shape index: {3}]
  %6 = xla_tuple %s2, %s3, %s4, %s5
  %s7 = sld [smem:[#allocation0]]
  $region65: #{tpu_custom_call.1} parent=0
    _
  %s9 = ssub.s32 1, %s7
  %s10 = scalar_select 0, %s9, %s7
  loop: start=0, step=1, limit=4
  $region2: #{tpu_custom_call.1} parent=0 // loop_pre_header
    _
  $region3: #{tpu_custom_call.1} parent=0 // loop_header
    %s12 = sphi 0, %s16
    %p13 = scmp.ge.s32.totalorder %s12, 4
    %s19 = sphi 0, %s31
    %s20 = sphi 0, %s27
    %s21 = sphi 0, %s19
    %s22 = sphi 0, %s20
    %s23 = sphi 0, %s21
    %s24 = sphi 0, %s22
    %s36 = sphi 0, %s38
    %s39 = sphi 0, %s36
    %s40 = sphi 0, %s39
    %s56 = sphi 0, %s40
    %s62 = sphi 0, %s64
    %s65 = sphi 0, %s62
    %s66 = sphi 0, %s65
    %s82 = sphi 0, %s66
    %s90 = sphi 0, %s92
    %s93 = sphi 0, %s90
    %s94 = sphi 0, %s93
    %s110 = sphi 0, %s94
    %s118 = sphi 0, %s120
    %s121 = sphi 0, %s118
    %s122 = sphi 0, %s121
    %s138 = sphi 0, %s122
    %s146 = sphi 0, %s148
    %s149 = sphi 0, %s146
    %s150 = sphi 0, %s149
    %s166 = sphi 0, %s150
    %s174 = sphi 0, %s176
    %s177 = sphi 0, %s174
    %s178 = sphi 0, %s177
    %s194 = sphi 0, %s178
  $region4: #{tpu_custom_call.1} parent=0 // loop_header_branch
    %15 = sbr.rel (%p13) target = $region8
  $region5: #{tpu_custom_call.1} parent=0 // loop_body
    %s17 = ssub.s32 %s12, 1
    %s18 = ssub.s32 %s12, 2
    %s25 = sadd.s32 1, %s20
    %p26 = scmp.ge.s32.totalorder %s25, 1
    %s27 = scalar_select %p26, 0, %s25
    %s28 = sadd.s32 1, %s19
    %s29 = scalar_select %p26, %s28, %s19
    %p30 = scmp.ge.s32.totalorder %s29, 2
    %s31 = scalar_select %p30, 0, %s29
    %s32 = ssub.s32 %s19, %s31
    %s33 = ssub.s32 %s20, %s27
    %s34 = sor.u32 %s32, %s33
    %p35 = scmp.eq.s32.totalorder %s34, 0
    %s37 = sadd.s32 %s36, 1
    %s38 = scalar_select %p35, %s36, %s37
    %p41 = pneg %p35
    %p42 = scmp.eq.s32.totalorder %s12, 1
    %p43 = por %p41, %p42
    %p44 = scmp.ne.s32.totalorder %s36, %s39
    %p45 = scmp.eq.s32.totalorder %s12, 0
    %p46 = por %p44, %p45
    %p47 = scmp.ne.s32.totalorder %s36, %s39
    %p48 = scmp.eq.s32.totalorder %s17, 1
    %p49 = por %p47, %p48
    %p50 = scmp.ne.s32.totalorder %s39, %s40
    %p51 = scmp.eq.s32.totalorder %s17, 0
    %p52 = por %p50, %p51
    %p53 = scmp.ne.s32.totalorder %s39, %s40
    %p54 = scmp.eq.s32.totalorder %s18, 1
    %p55 = por %p53, %p54
    %p57 = scmp.ne.s32.totalorder %s40, %s56
    %p58 = scmp.eq.s32.totalorder %s18, 0
    %p59 = por %p57, %p58
    %s60 = ssub.s32 %s20, %s27
    %p61 = scmp.eq.s32.totalorder %s60, 0
    %s63 = sadd.s32 %s62, 1
    %s64 = scalar_select %p61, %s62, %s63
    %p67 = pneg %p61
    %p68 = scmp.eq.s32.totalorder %s12, 1
    %p69 = por %p67, %p68
    %p70 = scmp.ne.s32.totalorder %s62, %s65
    %p71 = scmp.eq.s32.totalorder %s12, 0
    %p72 = por %p70, %p71
    %p73 = scmp.ne.s32.totalorder %s62, %s65
    %p74 = scmp.eq.s32.totalorder %s17, 1
    %p75 = por %p73, %p74
    %p76 = scmp.ne.s32.totalorder %s65, %s66
    %p77 = scmp.eq.s32.totalorder %s17, 0
    %p78 = por %p76, %p77
    %p79 = scmp.ne.s32.totalorder %s65, %s66
    %p80 = scmp.eq.s32.totalorder %s18, 1
    %p81 = por %p79, %p80
    %p83 = scmp.ne.s32.totalorder %s66, %s82
    %p84 = scmp.eq.s32.totalorder %s18, 0
    %p85 = por %p83, %p84
    %s86 = ssub.s32 %s19, %s31
    %s87 = ssub.s32 %s20, %s27
    %s88 = sor.u32 %s86, %s87
    %p89 = scmp.eq.s32.totalorder %s88, 0
    %s91 = sadd.s32 %s90, 1
    %s92 = scalar_select %p89, %s90, %s91
    %p95 = pneg %p89
    %p96 = scmp.eq.s32.totalorder %s12, 1
    %p97 = por %p95, %p96
    %p98 = scmp.ne.s32.totalorder %s90, %s93
    %p99 = scmp.eq.s32.totalorder %s12, 0
    %p100 = por %p98, %p99
    %p101 = scmp.ne.s32.totalorder %s90, %s93
    %p102 = scmp.eq.s32.totalorder %s17, 1
    %p103 = por %p101, %p102
    %p104 = scmp.ne.s32.totalorder %s93, %s94
    %p105 = scmp.eq.s32.totalorder %s17, 0
    %p106 = por %p104, %p105
    %p107 = scmp.ne.s32.totalorder %s93, %s94
    %p108 = scmp.eq.s32.totalorder %s18, 1
    %p109 = por %p107, %p108
    %p111 = scmp.ne.s32.totalorder %s94, %s110
    %p112 = scmp.eq.s32.totalorder %s18, 0
    %p113 = por %p111, %p112
    %s114 = ssub.s32 %s19, %s31
    %s115 = ssub.s32 %s20, %s27
    %s116 = sor.u32 %s114, %s115
    %p117 = scmp.eq.s32.totalorder %s116, 0
    %s119 = sadd.s32 %s118, 1
    %s120 = scalar_select %p117, %s118, %s119
    %p123 = pneg %p117
    %p124 = scmp.eq.s32.totalorder %s12, 1
    %p125 = por %p123, %p124
    %p126 = scmp.ne.s32.totalorder %s118, %s121
    %p127 = scmp.eq.s32.totalorder %s12, 0
    %p128 = por %p126, %p127
    %p129 = scmp.ne.s32.totalorder %s118, %s121
    %p130 = scmp.eq.s32.totalorder %s17, 1
    %p131 = por %p129, %p130
    %p132 = scmp.ne.s32.totalorder %s121, %s122
    %p133 = scmp.eq.s32.totalorder %s17, 0
    %p134 = por %p132, %p133
    %p135 = scmp.ne.s32.totalorder %s121, %s122
    %p136 = scmp.eq.s32.totalorder %s18, 1
    %p137 = por %p135, %p136
    %p139 = scmp.ne.s32.totalorder %s122, %s138
    %p140 = scmp.eq.s32.totalorder %s18, 0
    %p141 = por %p139, %p140
    %s142 = ssub.s32 %s19, %s31
    %s143 = ssub.s32 %s20, %s27
    %s144 = sor.u32 %s142, %s143
    %p145 = scmp.eq.s32.totalorder %s144, 0
    %s147 = sadd.s32 %s146, 1
    %s148 = scalar_select %p145, %s146, %s147
    %p151 = pneg %p145
    %p152 = scmp.eq.s32.totalorder %s12, 1
    %p153 = por %p151, %p152
    %p154 = scmp.ne.s32.totalorder %s146, %s149
    %p155 = scmp.eq.s32.totalorder %s12, 0
    %p156 = por %p154, %p155
    %p157 = scmp.ne.s32.totalorder %s146, %s149
    %p158 = scmp.eq.s32.totalorder %s17, 1
    %p159 = por %p157, %p158
    %p160 = scmp.ne.s32.totalorder %s149, %s150
    %p161 = scmp.eq.s32.totalorder %s17, 0
    %p162 = por %p160, %p161
    %p163 = scmp.ne.s32.totalorder %s149, %s150
    %p164 = scmp.eq.s32.totalorder %s18, 1
    %p165 = por %p163, %p164
    %p167 = scmp.ne.s32.totalorder %s150, %s166
    %p168 = scmp.eq.s32.totalorder %s18, 0
    %p169 = por %p167, %p168
    %s170 = ssub.s32 %s19, %s31
    %s171 = ssub.s32 %s20, %s27
    %s172 = sor.u32 %s170, %s171
    %p173 = scmp.eq.s32.totalorder %s172, 0
    %s175 = sadd.s32 %s174, 1
    %s176 = scalar_select %p173, %s174, %s175
    %p179 = pneg %p173
    %p180 = scmp.eq.s32.totalorder %s12, 1
    %p181 = por %p179, %p180
    %p182 = scmp.ne.s32.totalorder %s174, %s177
    %p183 = scmp.eq.s32.totalorder %s12, 0
    %p184 = por %p182, %p183
    %p185 = scmp.ne.s32.totalorder %s174, %s177
    %p186 = scmp.eq.s32.totalorder %s17, 1
    %p187 = por %p185, %p186
    %p188 = scmp.ne.s32.totalorder %s177, %s178
    %p189 = scmp.eq.s32.totalorder %s17, 0
    %p190 = por %p188, %p189
    %p191 = scmp.ne.s32.totalorder %s177, %s178
    %p192 = scmp.eq.s32.totalorder %s18, 1
    %p193 = por %p191, %p192
    %p195 = scmp.ne.s32.totalorder %s178, %s194
    %p196 = scmp.eq.s32.totalorder %s18, 0
    %p197 = por %p195, %p196
    %p198 = scmp.le.s32.totalorder 1, %s12
    %p199 = scmp.lt.s32.totalorder %s12, 3
    %p200 = pnand %p198, %p199
    %p201 = pneg %p200
    // Predicated region
    $region9: #{tpu_custom_call.1} parent=5 // pred_check
      _
    $region10: #{tpu_custom_call.1} parent=5 // pred_check_branch
      %203 = sbr.rel (%p200) target = $region12
    $region11: #{tpu_custom_call.1} parent=5 // pred_region
      %s204 = ssub.s32 %s12, 1
      // Predicated region
      $region13: #{tpu_custom_call.1} parent=11 // pred_check
        %p205 = pneg %p78
      $region14: #{tpu_custom_call.1} parent=11 // pred_check_branch
        %207 = sbr.rel (%p205) target = $region16
      $region15: #{tpu_custom_call.1} parent=11 // pred_region
        %p208 = scmp.lt.s32.totalorder %s22, 0
        %s209 = scalar_select %p208, %s22, 0
        %s210 = smul.addr %s209, 8
        %s211 = scalar_lea.vmem %s1, %s210
      $region16: #{tpu_custom_call.1} parent=11 // pred_fallthru
        _
    $region12: #{tpu_custom_call.1} parent=5 // pred_fallthru
      _
    %p212 = scmp.lt.s32.totalorder %s12, 2
    // Predicated region
    $region17: #{tpu_custom_call.1} parent=5 // pred_check
      %p213 = pneg %p212
    $region18: #{tpu_custom_call.1} parent=5 // pred_check_branch
      %215 = sbr.rel (%p213) target = $region20
    $region19: #{tpu_custom_call.1} parent=5 // pred_region
      // Predicated region
      $region21: #{tpu_custom_call.1} parent=19 // pred_check
        %p216 = pneg %p46
      $region22: #{tpu_custom_call.1} parent=19 // pred_check_branch
        %218 = sbr.rel (%p216) target = $region24
      $region23: #{tpu_custom_call.1} parent=19 // pred_region
        %p219 = scmp.lt.s32.totalorder %s19, 1
        %s220 = scalar_select %p219, %s19, 1
        %p221 = scmp.lt.s32.totalorder %s20, 0
        %s222 = scalar_select %p221, %s20, 0
        %s223 = smul.addr %s220, 32
        %s224 = sadd.s32 %s222, %s223
        %s225 = smul.addr %s224, 8
        %s226 = scalar_lea.vmem %s0, %s225
      $region24: #{tpu_custom_call.1} parent=19 // pred_fallthru
        _
    $region20: #{tpu_custom_call.1} parent=5 // pred_fallthru
      _
    %p227 = scmp.le.s32.totalorder 1, %s12
    %p228 = scmp.lt.s32.totalorder %s12, 3
    %p229 = pnand %p227, %p228
    %p230 = pneg %p229
    // Predicated region
    $region25: #{tpu_custom_call.1} parent=5 // pred_check
      _
    $region26: #{tpu_custom_call.1} parent=5 // pred_check_branch
      %232 = sbr.rel (%p229) target = $region28
    $region27: #{tpu_custom_call.1} parent=5 // pred_region
      %s233 = ssub.s32 %s12, 1
      %p234 = scmp.lt.s32.totalorder %s21, 1
      %s235 = scalar_select %p234, %s21, 1
      %p236 = scmp.lt.s32.totalorder %s22, 0
      %s237 = scalar_select %p236, %s22, 0
      %s238 = smul.addr %s235, 32
      %s239 = sadd.s32 %s237, %s238
      %s240 = smul.addr %s239, 8
      %s241 = scalar_lea.vmem %s0, %s240
      %p242 = pneg %p52
      %p243 = pneg %p49
      %p244 = scmp.lt.s32.totalorder %s22, 0
      %s245 = scalar_select %p244, %s22, 0
      %s246 = smul.addr %s245, 8
      %s247 = scalar_lea.vmem %s1, %s246
      %p248 = pneg %p78
      %p249 = pneg %p75
      %p250 = pneg %p106
      %p251 = pneg %p103
      %p252 = scmp.lt.s32.totalorder %s21, 1
      %s253 = scalar_select %p252, %s21, 1
      %p254 = scmp.lt.s32.totalorder %s22, 0
      %s255 = scalar_select %p254, %s22, 0
      %s256 = smul.addr %s253, 32
      %s257 = sadd.s32 %s255, %s256
      %s258 = smul.addr %s257, 8
      %s259 = scalar_lea.vmem %s2, %s258
      %p260 = pneg %p134
      %p261 = pneg %p131
      %p262 = scmp.lt.s32.totalorder %s21, 1
      %s263 = scalar_select %p262, %s21, 1
      %p264 = scmp.lt.s32.totalorder %s22, 0
      %s265 = scalar_select %p264, %s22, 0
      %s266 = smul.addr %s263, 32
      %s267 = sadd.s32 %s265, %s266
      %s268 = smul.addr %s267, 8
      %s269 = scalar_lea.vmem %s3, %s268
      %p270 = pneg %p162
      %p271 = pneg %p159
      %p272 = scmp.lt.s32.totalorder %s21, 1
      %s273 = scalar_select %p272, %s21, 1
      %p274 = scmp.lt.s32.totalorder %s22, 0
      %s275 = scalar_select %p274, %s22, 0
      %s276 = smul.addr %s273, 32
      %s277 = sadd.s32 %s275, %s276
      %s278 = smul.addr %s277, 8
      %s279 = scalar_lea.vmem %s4, %s278
      %p280 = pneg %p190
      %p281 = pneg %p187
      %p282 = scmp.lt.s32.totalorder %s21, 1
      %s283 = scalar_select %p282, %s21, 1
      %p284 = scmp.lt.s32.totalorder %s22, 0
      %s285 = scalar_select %p284, %s22, 0
      %s286 = smul.addr %s283, 32
      %s287 = sadd.s32 %s285, %s286
      %s288 = smul.addr %s287, 8
      %s289 = scalar_lea.vmem %s5, %s288
      %p290 = scmp.lt.s32.totalorder %s21, 1
      %s291 = scalar_select %p290, %s21, 1
      %p292 = scmp.lt.s32.totalorder %s22, 0
      %s293 = scalar_select %p292, %s22, 0
      %s294 = smul.addr %s291, 32
      %s295 = sadd.s32 %s293, %s294
      %s296 = smul.addr %s295, 8
      %s297 = scalar_lea.vmem %s0, %s296
      %p298 = scmp.lt.s32.totalorder %s22, 0
      %s299 = scalar_select %p298, %s22, 0
      %s300 = smul.addr %s299, 8
      %s301 = scalar_lea.vmem %s1, %s300
      %p302 = scmp.lt.s32.totalorder %s21, 1
      %s303 = scalar_select %p302, %s21, 1
      %p304 = scmp.lt.s32.totalorder %s22, 0
      %s305 = scalar_select %p304, %s22, 0
      %s306 = smul.addr %s303, 32
      %s307 = sadd.s32 %s305, %s306
      %s308 = smul.addr %s307, 8
      %s309 = scalar_lea.vmem %s2, %s308
      %p310 = scmp.lt.s32.totalorder %s21, 1
      %s311 = scalar_select %p310, %s21, 1
      %p312 = scmp.lt.s32.totalorder %s22, 0
      %s313 = scalar_select %p312, %s22, 0
      %s314 = smul.addr %s311, 32
      %s315 = sadd.s32 %s313, %s314
      %s316 = smul.addr %s315, 8
      %s317 = scalar_lea.vmem %s3, %s316
      %p318 = scmp.lt.s32.totalorder %s21, 1
      %s319 = scalar_select %p318, %s21, 1
      %p320 = scmp.lt.s32.totalorder %s22, 0
      %s321 = scalar_select %p320, %s22, 0
      %s322 = smul.addr %s319, 32
      %s323 = sadd.s32 %s321, %s322
      %s324 = smul.addr %s323, 8
      %s325 = scalar_lea.vmem %s4, %s324
      %p326 = scmp.lt.s32.totalorder %s21, 1
      %s327 = scalar_select %p326, %s21, 1
      %p328 = scmp.lt.s32.totalorder %s22, 0
      %s329 = scalar_select %p328, %s22, 0
      %s330 = smul.addr %s327, 32
      %s331 = sadd.s32 %s329, %s330
      %s332 = smul.addr %s331, 8
      %s333 = scalar_lea.vmem %s5, %s332
      %v334 = vld [vmem:[%s297] sm:$0xff]
      %v335 = vld [vmem:[%s297 + $0x8] sm:$0xff]
      %v336 = vld [vmem:[%s297 + $0x10] sm:$0xff]
      %v337 = vld [vmem:[%s297 + $0x18] sm:$0xff]
      %v338 = vld [vmem:[%s297 + $0x20] sm:$0xff]
      %v339 = vld [vmem:[%s297 + $0x28] sm:$0xff]
      %v340 = vld [vmem:[%s297 + $0x30] sm:$0xff]
      %v341 = vld [vmem:[%s297 + $0x38] sm:$0xff]
      %v342 = vld [vmem:[%s297 + $0x40] sm:$0xff]
      %v343 = vld [vmem:[%s297 + $0x48] sm:$0xff]
      %v344 = vld [vmem:[%s297 + $0x50] sm:$0xff]
      %v345 = vld [vmem:[%s297 + $0x58] sm:$0xff]
      %v346 = vld [vmem:[%s297 + $0x60] sm:$0xff]
      %v347 = vld [vmem:[%s297 + $0x68] sm:$0xff]
      %v348 = vld [vmem:[%s297 + $0x70] sm:$0xff]
      %v349 = vld [vmem:[%s297 + $0x78] sm:$0xff]
      %v350 = vld [vmem:[%s297 + $0x80] sm:$0xff]
      %v351 = vld [vmem:[%s297 + $0x88] sm:$0xff]
      %v352 = vld [vmem:[%s297 + $0x90] sm:$0xff]
      %v353 = vld [vmem:[%s297 + $0x98] sm:$0xff]
      %v354 = vld [vmem:[%s297 + $0xa0] sm:$0xff]
      %v355 = vld [vmem:[%s297 + $0xa8] sm:$0xff]
      %v356 = vld [vmem:[%s297 + $0xb0] sm:$0xff]
      %v357 = vld [vmem:[%s297 + $0xb8] sm:$0xff]
      %v358 = vld [vmem:[%s297 + $0xc0] sm:$0xff]
      %v359 = vld [vmem:[%s297 + $0xc8] sm:$0xff]
      %v360 = vld [vmem:[%s297 + $0xd0] sm:$0xff]
      %v361 = vld [vmem:[%s297 + $0xd8] sm:$0xff]
      %v362 = vld [vmem:[%s297 + $0xe0] sm:$0xff]
      %v363 = vld [vmem:[%s297 + $0xe8] sm:$0xff]
      %v364 = vld [vmem:[%s297 + $0xf0] sm:$0xff]
      %v365 = vld [vmem:[%s297 + $0xf8] sm:$0xff]
      %v366 = vld [vmem:[%s301 + $0x4] sm:$0x1]
      %v367 = vld [vmem:[%s301 + $0x5] sm:$0x1]
      %v368 = vperm.slane %v366, 0
      %v369 = vmul.f32 %v368, %v334
      %v370 = vmul.f32 %v368, %v335
      %v371 = vmul.f32 %v368, %v336
      %v372 = vmul.f32 %v368, %v337
      %v373 = vmul.f32 %v368, %v338
      %v374 = vmul.f32 %v368, %v339
      %v375 = vmul.f32 %v368, %v340
      %v376 = vmul.f32 %v368, %v341
      %v377 = vmul.f32 %v368, %v342
      %v378 = vmul.f32 %v368, %v343
      %v379 = vmul.f32 %v368, %v344
      %v380 = vmul.f32 %v368, %v345
      %v381 = vmul.f32 %v368, %v346
      %v382 = vmul.f32 %v368, %v347
      %v383 = vmul.f32 %v368, %v348
      %v384 = vmul.f32 %v368, %v349
      %v385 = vmul.f32 %v368, %v350
      %v386 = vmul.f32 %v368, %v351
      %v387 = vmul.f32 %v368, %v352
      %v388 = vmul.f32 %v368, %v353
      %v389 = vmul.f32 %v368, %v354
      %v390 = vmul.f32 %v368, %v355
      %v391 = vmul.f32 %v368, %v356
      %v392 = vmul.f32 %v368, %v357
      %v393 = vmul.f32 %v368, %v358
      %v394 = vmul.f32 %v368, %v359
      %v395 = vmul.f32 %v368, %v360
      %v396 = vmul.f32 %v368, %v361
      %v397 = vmul.f32 %v368, %v362
      %v398 = vmul.f32 %v368, %v363
      %v399 = vperm.slane %v367, 0
      %v400 = vadd.f32 %v369, %v399
      %v401 = vadd.f32 %v370, %v399
      %v402 = vadd.f32 %v371, %v399
      %v403 = vadd.f32 %v372, %v399
      %v404 = vadd.f32 %v373, %v399
      %v405 = vadd.f32 %v374, %v399
      %v406 = vadd.f32 %v375, %v399
      %v407 = vadd.f32 %v376, %v399
      %v408 = vadd.f32 %v377, %v399
      %v409 = vadd.f32 %v378, %v399
      %v410 = vadd.f32 %v379, %v399
      %v411 = vadd.f32 %v380, %v399
      %v412 = vadd.f32 %v381, %v399
      %v413 = vadd.f32 %v382, %v399
      %v414 = vadd.f32 %v383, %v399
      %v415 = vadd.f32 %v384, %v399
      %v416 = vadd.f32 %v385, %v399
      %v417 = vadd.f32 %v386, %v399
      %v418 = vadd.f32 %v387, %v399
      %v419 = vadd.f32 %v388, %v399
      %v420 = vadd.f32 %v389, %v399
      %v421 = vadd.f32 %v390, %v399
      %v422 = vadd.f32 %v391, %v399
      %v423 = vadd.f32 %v392, %v399
      %v424 = vadd.f32 %v393, %v399
      %v425 = vadd.f32 %v394, %v399
      %v426 = vadd.f32 %v395, %v399
      %v427 = vadd.f32 %v396, %v399
      %v428 = vadd.f32 %v397, %v399
      %v429 = vadd.f32 %v398, %v399
      %v430 = vadd.f32 %v400, %v336
      %v431 = vadd.f32 %v401, %v337
      %v432 = vadd.f32 %v402, %v338
      %v433 = vadd.f32 %v403, %v339
      %v434 = vadd.f32 %v404, %v340
      %v435 = vadd.f32 %v405, %v341
      %v436 = vadd.f32 %v406, %v342
      %v437 = vadd.f32 %v407, %v343
      %v438 = vadd.f32 %v408, %v344
      %v439 = vadd.f32 %v409, %v345
      %v440 = vadd.f32 %v410, %v346
      %v441 = vadd.f32 %v411, %v347
      %v442 = vadd.f32 %v412, %v348
      %v443 = vadd.f32 %v413, %v349
      %v444 = vadd.f32 %v414, %v350
      %v445 = vadd.f32 %v415, %v351
      %v446 = vadd.f32 %v416, %v352
      %v447 = vadd.f32 %v417, %v353
      %v448 = vadd.f32 %v418, %v354
      %v449 = vadd.f32 %v419, %v355
      %v450 = vadd.f32 %v420, %v356
      %v451 = vadd.f32 %v421, %v357
      %v452 = vadd.f32 %v422, %v358
      %v453 = vadd.f32 %v423, %v359
      %v454 = vadd.f32 %v424, %v360
      %v455 = vadd.f32 %v425, %v361
      %v456 = vadd.f32 %v426, %v362
      %v457 = vadd.f32 %v427, %v363
      %v458 = vadd.f32 %v428, %v364
      %v459 = vadd.f32 %v429, %v365
      %v460 = vmax.f32 %v430, 0.0
      %v461 = vmax.f32 %v431, 0.0
      %v462 = vmax.f32 %v432, 0.0
      %v463 = vmax.f32 %v433, 0.0
      %v464 = vmax.f32 %v434, 0.0
      %v465 = vmax.f32 %v435, 0.0
      %v466 = vmax.f32 %v436, 0.0
      %v467 = vmax.f32 %v437, 0.0
      %v468 = vmax.f32 %v438, 0.0
      %v469 = vmax.f32 %v439, 0.0
      %v470 = vmax.f32 %v440, 0.0
      %v471 = vmax.f32 %v441, 0.0
      %v472 = vmax.f32 %v442, 0.0
      %v473 = vmax.f32 %v443, 0.0
      %v474 = vmax.f32 %v444, 0.0
      %v475 = vmax.f32 %v445, 0.0
      %v476 = vmax.f32 %v446, 0.0
      %v477 = vmax.f32 %v447, 0.0
      %v478 = vmax.f32 %v448, 0.0
      %v479 = vmax.f32 %v449, 0.0
      %v480 = vmax.f32 %v450, 0.0
      %v481 = vmax.f32 %v451, 0.0
      %v482 = vmax.f32 %v452, 0.0
      %v483 = vmax.f32 %v453, 0.0
      %v484 = vmax.f32 %v454, 0.0
      %v485 = vmax.f32 %v455, 0.0
      %v486 = vmax.f32 %v456, 0.0
      %v487 = vmax.f32 %v457, 0.0
      %v488 = vmax.f32 %v458, 0.0
      %v489 = vmax.f32 %v459, 0.0
      %vm490 = vcmask 31744
      %491 = vst.msk [vmem:[%s309] sm:$0xff] %vm490, %v334
      %492 = vst.msk [vmem:[%s309 + $0x8] sm:$0xff] %vm490, %v335
      %493 = vst.msk [vmem:[%s309 + $0x10] sm:$0xff] %vm490, %v460
      %494 = vst.msk [vmem:[%s309 + $0x18] sm:$0xff] %vm490, %v461
      %495 = vst.msk [vmem:[%s309 + $0x20] sm:$0xff] %vm490, %v462
      %496 = vst.msk [vmem:[%s309 + $0x28] sm:$0xff] %vm490, %v463
      %497 = vst.msk [vmem:[%s309 + $0x30] sm:$0xff] %vm490, %v464
      %498 = vst.msk [vmem:[%s309 + $0x38] sm:$0xff] %vm490, %v465
      %499 = vst.msk [vmem:[%s309 + $0x40] sm:$0xff] %vm490, %v466
      %500 = vst.msk [vmem:[%s309 + $0x48] sm:$0xff] %vm490, %v467
      %501 = vst.msk [vmem:[%s309 + $0x50] sm:$0xff] %vm490, %v468
      %502 = vst.msk [vmem:[%s309 + $0x58] sm:$0xff] %vm490, %v469
      %503 = vst.msk [vmem:[%s309 + $0x60] sm:$0xff] %vm490, %v470
      %504 = vst.msk [vmem:[%s309 + $0x68] sm:$0xff] %vm490, %v471
      %505 = vst.msk [vmem:[%s309 + $0x70] sm:$0xff] %vm490, %v472
      %506 = vst.msk [vmem:[%s309 + $0x78] sm:$0xff] %vm490, %v473
      %507 = vst.msk [vmem:[%s309 + $0x80] sm:$0xff] %vm490, %v474
      %508 = vst.msk [vmem:[%s309 + $0x88] sm:$0xff] %vm490, %v475
      %509 = vst.msk [vmem:[%s309 + $0x90] sm:$0xff] %vm490, %v476
      %510 = vst.msk [vmem:[%s309 + $0x98] sm:$0xff] %vm490, %v477
      %511 = vst.msk [vmem:[%s309 + $0xa0] sm:$0xff] %vm490, %v478
      %512 = vst.msk [vmem:[%s309 + $0xa8] sm:$0xff] %vm490, %v479
      %513 = vst.msk [vmem:[%s309 + $0xb0] sm:$0xff] %vm490, %v480
      %514 = vst.msk [vmem:[%s309 + $0xb8] sm:$0xff] %vm490, %v481
      %515 = vst.msk [vmem:[%s309 + $0xc0] sm:$0xff] %vm490, %v482
      %516 = vst.msk [vmem:[%s309 + $0xc8] sm:$0xff] %vm490, %v483
      %517 = vst.msk [vmem:[%s309 + $0xd0] sm:$0xff] %vm490, %v484
      %518 = vst.msk [vmem:[%s309 + $0xd8] sm:$0xff] %vm490, %v485
      %519 = vst.msk [vmem:[%s309 + $0xe0] sm:$0xff] %vm490, %v486
      %520 = vst.msk [vmem:[%s309 + $0xe8] sm:$0xff] %vm490, %v487
      %521 = vst.msk [vmem:[%s309 + $0xf0] sm:$0xff] %vm490, %v488
      %522 = vst.msk [vmem:[%s309 + $0xf8] sm:$0xff] %vm490, %v489
      %v523 = vld [vmem:[%s301 + $0x6] sm:$0x1]
      %v524 = vld [vmem:[%s301 + $0x7] sm:$0x1]
      %v525 = vperm.slane %v523, 0
      %v526 = vmul.f32 %v525, %v336
      %v527 = vmul.f32 %v525, %v337
      %v528 = vmul.f32 %v525, %v338
      %v529 = vmul.f32 %v525, %v339
      %v530 = vmul.f32 %v525, %v340
      %v531 = vmul.f32 %v525, %v341
      %v532 = vmul.f32 %v525, %v342
      %v533 = vmul.f32 %v525, %v343
      %v534 = vmul.f32 %v525, %v344
      %v535 = vmul.f32 %v525, %v345
      %v536 = vmul.f32 %v525, %v346
      %v537 = vmul.f32 %v525, %v347
      %v538 = vmul.f32 %v525, %v348
      %v539 = vmul.f32 %v525, %v349
      %v540 = vmul.f32 %v525, %v350
      %v541 = vmul.f32 %v525, %v351
      %v542 = vmul.f32 %v525, %v352
      %v543 = vmul.f32 %v525, %v353
      %v544 = vmul.f32 %v525, %v354
      %v545 = vmul.f32 %v525, %v355
      %v546 = vmul.f32 %v525, %v356
      %v547 = vmul.f32 %v525, %v357
      %v548 = vmul.f32 %v525, %v358
      %v549 = vmul.f32 %v525, %v359
      %v550 = vmul.f32 %v525, %v360
      %v551 = vmul.f32 %v525, %v361
      %v552 = vmul.f32 %v525, %v362
      %v553 = vmul.f32 %v525, %v363
      %v554 = vmul.f32 %v525, %v364
      %v555 = vmul.f32 %v525, %v365
      %v556 = vperm.slane %v524, 0
      %v557 = vadd.f32 %v526, %v556
      %v558 = vadd.f32 %v527, %v556
      %v559 = vadd.f32 %v528, %v556
      %v560 = vadd.f32 %v529, %v556
      %v561 = vadd.f32 %v530, %v556
      %v562 = vadd.f32 %v531, %v556
      %v563 = vadd.f32 %v532, %v556
      %v564 = vadd.f32 %v533, %v556
      %v565 = vadd.f32 %v534, %v556
      %v566 = vadd.f32 %v535, %v556
      %v567 = vadd.f32 %v536, %v556
      %v568 = vadd.f32 %v537, %v556
      %v569 = vadd.f32 %v538, %v556
      %v570 = vadd.f32 %v539, %v556
      %v571 = vadd.f32 %v540, %v556
      %v572 = vadd.f32 %v541, %v556
      %v573 = vadd.f32 %v542, %v556
      %v574 = vadd.f32 %v543, %v556
      %v575 = vadd.f32 %v544, %v556
      %v576 = vadd.f32 %v545, %v556
      %v577 = vadd.f32 %v546, %v556
      %v578 = vadd.f32 %v547, %v556
      %v579 = vadd.f32 %v548, %v556
      %v580 = vadd.f32 %v549, %v556
      %v581 = vadd.f32 %v550, %v556
      %v582 = vadd.f32 %v551, %v556
      %v583 = vadd.f32 %v552, %v556
      %v584 = vadd.f32 %v553, %v556
      %v585 = vadd.f32 %v554, %v556
      %v586 = vadd.f32 %v555, %v556
      %v587 = vadd.f32 %v557, %v334
      %v588 = vadd.f32 %v558, %v335
      %v589 = vadd.f32 %v559, %v336
      %v590 = vadd.f32 %v560, %v337
      %v591 = vadd.f32 %v561, %v338
      %v592 = vadd.f32 %v562, %v339
      %v593 = vadd.f32 %v563, %v340
      %v594 = vadd.f32 %v564, %v341
      %v595 = vadd.f32 %v565, %v342
      %v596 = vadd.f32 %v566, %v343
      %v597 = vadd.f32 %v567, %v344
      %v598 = vadd.f32 %v568, %v345
      %v599 = vadd.f32 %v569, %v346
      %v600 = vadd.f32 %v570, %v347
      %v601 = vadd.f32 %v571, %v348
      %v602 = vadd.f32 %v572, %v349
      %v603 = vadd.f32 %v573, %v350
      %v604 = vadd.f32 %v574, %v351
      %v605 = vadd.f32 %v575, %v352
      %v606 = vadd.f32 %v576, %v353
      %v607 = vadd.f32 %v577, %v354
      %v608 = vadd.f32 %v578, %v355
      %v609 = vadd.f32 %v579, %v356
      %v610 = vadd.f32 %v580, %v357
      %v611 = vadd.f32 %v581, %v358
      %v612 = vadd.f32 %v582, %v359
      %v613 = vadd.f32 %v583, %v360
      %v614 = vadd.f32 %v584, %v361
      %v615 = vadd.f32 %v585, %v362
      %v616 = vadd.f32 %v586, %v363
      %v617 = vmax.f32 %v587, 0.0
      %v618 = vmax.f32 %v588, 0.0
      %v619 = vmax.f32 %v589, 0.0
      %v620 = vmax.f32 %v590, 0.0
      %v621 = vmax.f32 %v591, 0.0
      %v622 = vmax.f32 %v592, 0.0
      %v623 = vmax.f32 %v593, 0.0
      %v624 = vmax.f32 %v594, 0.0
      %v625 = vmax.f32 %v595, 0.0
      %v626 = vmax.f32 %v596, 0.0
      %v627 = vmax.f32 %v597, 0.0
      %v628 = vmax.f32 %v598, 0.0
      %v629 = vmax.f32 %v599, 0.0
      %v630 = vmax.f32 %v600, 0.0
      %v631 = vmax.f32 %v601, 0.0
      %v632 = vmax.f32 %v602, 0.0
      %v633 = vmax.f32 %v603, 0.0
      %v634 = vmax.f32 %v604, 0.0
      %v635 = vmax.f32 %v605, 0.0
      %v636 = vmax.f32 %v606, 0.0
      %v637 = vmax.f32 %v607, 0.0
      %v638 = vmax.f32 %v608, 0.0
      %v639 = vmax.f32 %v609, 0.0
      %v640 = vmax.f32 %v610, 0.0
      %v641 = vmax.f32 %v611, 0.0
      %v642 = vmax.f32 %v612, 0.0
      %v643 = vmax.f32 %v613, 0.0
      %v644 = vmax.f32 %v614, 0.0
      %v645 = vmax.f32 %v615, 0.0
      %v646 = vmax.f32 %v616, 0.0
      %647 = vst.msk [vmem:[%s325] sm:$0xff] %vm490, %v617
      %648 = vst.msk [vmem:[%s325 + $0x8] sm:$0xff] %vm490, %v618
      %649 = vst.msk [vmem:[%s325 + $0x10] sm:$0xff] %vm490, %v619
      %650 = vst.msk [vmem:[%s325 + $0x18] sm:$0xff] %vm490, %v620
      %651 = vst.msk [vmem:[%s325 + $0x20] sm:$0xff] %vm490, %v621
      %652 = vst.msk [vmem:[%s325 + $0x28] sm:$0xff] %vm490, %v622
      %653 = vst.msk [vmem:[%s325 + $0x30] sm:$0xff] %vm490, %v623
      %654 = vst.msk [vmem:[%s325 + $0x38] sm:$0xff] %vm490, %v624
      %655 = vst.msk [vmem:[%s325 + $0x40] sm:$0xff] %vm490, %v625
      %656 = vst.msk [vmem:[%s325 + $0x48] sm:$0xff] %vm490, %v626
      %657 = vst.msk [vmem:[%s325 + $0x50] sm:$0xff] %vm490, %v627
      %658 = vst.msk [vmem:[%s325 + $0x58] sm:$0xff] %vm490, %v628
      %659 = vst.msk [vmem:[%s325 + $0x60] sm:$0xff] %vm490, %v629
      %660 = vst.msk [vmem:[%s325 + $0x68] sm:$0xff] %vm490, %v630
      %661 = vst.msk [vmem:[%s325 + $0x70] sm:$0xff] %vm490, %v631
      %662 = vst.msk [vmem:[%s325 + $0x78] sm:$0xff] %vm490, %v632
      %663 = vst.msk [vmem:[%s325 + $0x80] sm:$0xff] %vm490, %v633
      %664 = vst.msk [vmem:[%s325 + $0x88] sm:$0xff] %vm490, %v634
      %665 = vst.msk [vmem:[%s325 + $0x90] sm:$0xff] %vm490, %v635
      %666 = vst.msk [vmem:[%s325 + $0x98] sm:$0xff] %vm490, %v636
      %667 = vst.msk [vmem:[%s325 + $0xa0] sm:$0xff] %vm490, %v637
      %668 = vst.msk [vmem:[%s325 + $0xa8] sm:$0xff] %vm490, %v638
      %669 = vst.msk [vmem:[%s325 + $0xb0] sm:$0xff] %vm490, %v639
      %670 = vst.msk [vmem:[%s325 + $0xb8] sm:$0xff] %vm490, %v640
      %671 = vst.msk [vmem:[%s325 + $0xc0] sm:$0xff] %vm490, %v641
      %672 = vst.msk [vmem:[%s325 + $0xc8] sm:$0xff] %vm490, %v642
      %673 = vst.msk [vmem:[%s325 + $0xd0] sm:$0xff] %vm490, %v643
      %674 = vst.msk [vmem:[%s325 + $0xd8] sm:$0xff] %vm490, %v644
      %675 = vst.msk [vmem:[%s325 + $0xe0] sm:$0xff] %vm490, %v645
      %676 = vst.msk [vmem:[%s325 + $0xe8] sm:$0xff] %vm490, %v646
      %677 = vst.msk [vmem:[%s325 + $0xf0] sm:$0xff] %vm490, %v364
      %678 = vst.msk [vmem:[%s325 + $0xf8] sm:$0xff] %vm490, %v365
      %v679 = vld [vmem:[%s301] sm:$0x1]
      %v680 = vld [vmem:[%s301 + $0x1] sm:$0x1]
      %v681 = vperm.slane %v679, 0
      %v682 = vmul.f32 %v681, %v334
      %v683 = vmul.f32 %v681, %v335
      %v684 = vmul.f32 %v681, %v336
      %v685 = vmul.f32 %v681, %v337
      %v686 = vmul.f32 %v681, %v338
      %v687 = vmul.f32 %v681, %v339
      %v688 = vmul.f32 %v681, %v340
      %v689 = vmul.f32 %v681, %v341
      %v690 = vmul.f32 %v681, %v342
      %v691 = vmul.f32 %v681, %v343
      %v692 = vmul.f32 %v681, %v344
      %v693 = vmul.f32 %v681, %v345
      %v694 = vmul.f32 %v681, %v346
      %v695 = vmul.f32 %v681, %v347
      %v696 = vmul.f32 %v681, %v348
      %v697 = vmul.f32 %v681, %v349
      %v698 = vmul.f32 %v681, %v350
      %v699 = vmul.f32 %v681, %v351
      %v700 = vmul.f32 %v681, %v352
      %v701 = vmul.f32 %v681, %v353
      %v702 = vmul.f32 %v681, %v354
      %v703 = vmul.f32 %v681, %v355
      %v704 = vmul.f32 %v681, %v356
      %v705 = vmul.f32 %v681, %v357
      %v706 = vmul.f32 %v681, %v358
      %v707 = vmul.f32 %v681, %v359
      %v708 = vmul.f32 %v681, %v360
      %v709 = vmul.f32 %v681, %v361
      %v710 = vmul.f32 %v681, %v362
      %v711 = vmul.f32 %v681, %v363
      %v712 = vmul.f32 %v681, %v364
      %v713 = vmul.f32 %v681, %v365
      %v714 = vperm.slane %v680, 0
      %v715 = vadd.f32 %v682, %v714
      %v716 = vadd.f32 %v683, %v714
      %v717 = vadd.f32 %v684, %v714
      %v718 = vadd.f32 %v685, %v714
      %v719 = vadd.f32 %v686, %v714
      %v720 = vadd.f32 %v687, %v714
      %v721 = vadd.f32 %v688, %v714
      %v722 = vadd.f32 %v689, %v714
      %v723 = vadd.f32 %v690, %v714
      %v724 = vadd.f32 %v691, %v714
      %v725 = vadd.f32 %v692, %v714
      %v726 = vadd.f32 %v693, %v714
      %v727 = vadd.f32 %v694, %v714
      %v728 = vadd.f32 %v695, %v714
      %v729 = vadd.f32 %v696, %v714
      %v730 = vadd.f32 %v697, %v714
      %v731 = vadd.f32 %v698, %v714
      %v732 = vadd.f32 %v699, %v714
      %v733 = vadd.f32 %v700, %v714
      %v734 = vadd.f32 %v701, %v714
      %v735 = vadd.f32 %v702, %v714
      %v736 = vadd.f32 %v703, %v714
      %v737 = vadd.f32 %v704, %v714
      %v738 = vadd.f32 %v705, %v714
      %v739 = vadd.f32 %v706, %v714
      %v740 = vadd.f32 %v707, %v714
      %v741 = vadd.f32 %v708, %v714
      %v742 = vadd.f32 %v709, %v714
      %v743 = vadd.f32 %v710, %v714
      %v744 = vadd.f32 %v711, %v714
      %v745 = vadd.f32 %v712, %v714
      %v746 = vadd.f32 %v713, %v714
      %vm779 = vcmask 1046528
      %v780 = vrot.slane %v334, 1
      %v781 = vrot.slane %v335, 1
      %v782 = vsel %vm779, %v780, %v781
      %v783 = vrot.slane %v336, 1
      %v784 = vrot.slane %v337, 1
      %v785 = vsel %vm779, %v783, %v784
      %v786 = vrot.slane %v338, 1
      %v787 = vrot.slane %v339, 1
      %v788 = vsel %vm779, %v786, %v787
      %v789 = vrot.slane %v340, 1
      %v790 = vrot.slane %v341, 1
      %v791 = vsel %vm779, %v789, %v790
      %v792 = vrot.slane %v342, 1
      %v793 = vrot.slane %v343, 1
      %v794 = vsel %vm779, %v792, %v793
      %v795 = vrot.slane %v344, 1
      %v796 = vrot.slane %v345, 1
      %v797 = vsel %vm779, %v795, %v796
      %v798 = vrot.slane %v346, 1
      %v799 = vrot.slane %v347, 1
      %v800 = vsel %vm779, %v798, %v799
      %v801 = vrot.slane %v348, 1
      %v802 = vrot.slane %v349, 1
      %v803 = vsel %vm779, %v801, %v802
      %v804 = vrot.slane %v350, 1
      %v805 = vrot.slane %v351, 1
      %v806 = vsel %vm779, %v804, %v805
      %v807 = vrot.slane %v352, 1
      %v808 = vrot.slane %v353, 1
      %v809 = vsel %vm779, %v807, %v808
      %v810 = vrot.slane %v354, 1
      %v811 = vrot.slane %v355, 1
      %v812 = vsel %vm779, %v810, %v811
      %v813 = vrot.slane %v356, 1
      %v814 = vrot.slane %v357, 1
      %v815 = vsel %vm779, %v813, %v814
      %v816 = vrot.slane %v358, 1
      %v817 = vrot.slane %v359, 1
      %v818 = vsel %vm779, %v816, %v817
      %v819 = vrot.slane %v360, 1
      %v820 = vrot.slane %v361, 1
      %v821 = vsel %vm779, %v819, %v820
      %v822 = vrot.slane %v362, 1
      %v823 = vrot.slane %v363, 1
      %v824 = vsel %vm779, %v822, %v823
      %v825 = vrot.slane %v364, 1
      %v826 = vrot.slane %v365, 1
      %v827 = vsel %vm779, %v825, %v826
      %v860 = vadd.f32 %v715, %v782
      %v861 = vadd.f32 %v716, %v781
      %v862 = vadd.f32 %v717, %v785
      %v863 = vadd.f32 %v718, %v784
      %v864 = vadd.f32 %v719, %v788
      %v865 = vadd.f32 %v720, %v787
      %v866 = vadd.f32 %v721, %v791
      %v867 = vadd.f32 %v722, %v790
      %v868 = vadd.f32 %v723, %v794
      %v869 = vadd.f32 %v724, %v793
      %v870 = vadd.f32 %v725, %v797
      %v871 = vadd.f32 %v726, %v796
      %v872 = vadd.f32 %v727, %v800
      %v873 = vadd.f32 %v728, %v799
      %v874 = vadd.f32 %v729, %v803
      %v875 = vadd.f32 %v730, %v802
      %v876 = vadd.f32 %v731, %v806
      %v877 = vadd.f32 %v732, %v805
      %v878 = vadd.f32 %v733, %v809
      %v879 = vadd.f32 %v734, %v808
      %v880 = vadd.f32 %v735, %v812
      %v881 = vadd.f32 %v736, %v811
      %v882 = vadd.f32 %v737, %v815
      %v883 = vadd.f32 %v738, %v814
      %v884 = vadd.f32 %v739, %v818
      %v885 = vadd.f32 %v740, %v817
      %v886 = vadd.f32 %v741, %v821
      %v887 = vadd.f32 %v742, %v820
      %v888 = vadd.f32 %v743, %v824
      %v889 = vadd.f32 %v744, %v823
      %v890 = vadd.f32 %v745, %v827
      %v891 = vadd.f32 %v746, %v826
      %v892 = vmax.f32 %v860, 0.0
      %v893 = vmax.f32 %v861, 0.0
      %v894 = vmax.f32 %v862, 0.0
      %v895 = vmax.f32 %v863, 0.0
      %v896 = vmax.f32 %v864, 0.0
      %v897 = vmax.f32 %v865, 0.0
      %v898 = vmax.f32 %v866, 0.0
      %v899 = vmax.f32 %v867, 0.0
      %v900 = vmax.f32 %v868, 0.0
      %v901 = vmax.f32 %v869, 0.0
      %v902 = vmax.f32 %v870, 0.0
      %v903 = vmax.f32 %v871, 0.0
      %v904 = vmax.f32 %v872, 0.0
      %v905 = vmax.f32 %v873, 0.0
      %v906 = vmax.f32 %v874, 0.0
      %v907 = vmax.f32 %v875, 0.0
      %v908 = vmax.f32 %v876, 0.0
      %v909 = vmax.f32 %v877, 0.0
      %v910 = vmax.f32 %v878, 0.0
      %v911 = vmax.f32 %v879, 0.0
      %v912 = vmax.f32 %v880, 0.0
      %v913 = vmax.f32 %v881, 0.0
      %v914 = vmax.f32 %v882, 0.0
      %v915 = vmax.f32 %v883, 0.0
      %v916 = vmax.f32 %v884, 0.0
      %v917 = vmax.f32 %v885, 0.0
      %v918 = vmax.f32 %v886, 0.0
      %v919 = vmax.f32 %v887, 0.0
      %v920 = vmax.f32 %v888, 0.0
      %v921 = vmax.f32 %v889, 0.0
      %v922 = vmax.f32 %v890, 0.0
      %v923 = vmax.f32 %v891, 0.0
      %vm956 = vcmask 1040384
      %v957 = vrot.slane %v892, 7
      %v958 = vrot.slane %v893, 7
      %v959 = vsel %vm956, %v957, %v958
      %v960 = vrot.slane %v894, 7
      %v961 = vrot.slane %v895, 7
      %v962 = vsel %vm956, %v960, %v961
      %v963 = vrot.slane %v896, 7
      %v964 = vrot.slane %v897, 7
      %v965 = vsel %vm956, %v963, %v964
      %v966 = vrot.slane %v898, 7
      %v967 = vrot.slane %v899, 7
      %v968 = vsel %vm956, %v966, %v967
      %v969 = vrot.slane %v900, 7
      %v970 = vrot.slane %v901, 7
      %v971 = vsel %vm956, %v969, %v970
      %v972 = vrot.slane %v902, 7
      %v973 = vrot.slane %v903, 7
      %v974 = vsel %vm956, %v972, %v973
      %v975 = vrot.slane %v904, 7
      %v976 = vrot.slane %v905, 7
      %v977 = vsel %vm956, %v975, %v976
      %v978 = vrot.slane %v906, 7
      %v979 = vrot.slane %v907, 7
      %v980 = vsel %vm956, %v978, %v979
      %v981 = vrot.slane %v908, 7
      %v982 = vrot.slane %v909, 7
      %v983 = vsel %vm956, %v981, %v982
      %v984 = vrot.slane %v910, 7
      %v985 = vrot.slane %v911, 7
      %v986 = vsel %vm956, %v984, %v985
      %v987 = vrot.slane %v912, 7
      %v988 = vrot.slane %v913, 7
      %v989 = vsel %vm956, %v987, %v988
      %v990 = vrot.slane %v914, 7
      %v991 = vrot.slane %v915, 7
      %v992 = vsel %vm956, %v990, %v991
      %v993 = vrot.slane %v916, 7
      %v994 = vrot.slane %v917, 7
      %v995 = vsel %vm956, %v993, %v994
      %v996 = vrot.slane %v918, 7
      %v997 = vrot.slane %v919, 7
      %v998 = vsel %vm956, %v996, %v997
      %v999 = vrot.slane %v920, 7
      %v1000 = vrot.slane %v921, 7
      %v1001 = vsel %vm956, %v999, %v1000
      %v1002 = vrot.slane %v922, 7
      %v1003 = vrot.slane %v923, 7
      %v1004 = vsel %vm956, %v1002, %v1003
      %v1037 = vsel %vm956, %v334, %v957
      %v1038 = vsel %vm956, %v336, %v960
      %v1039 = vsel %vm956, %v338, %v963
      %v1040 = vsel %vm956, %v340, %v966
      %v1041 = vsel %vm956, %v342, %v969
      %v1042 = vsel %vm956, %v344, %v972
      %v1043 = vsel %vm956, %v346, %v975
      %v1044 = vsel %vm956, %v348, %v978
      %v1045 = vsel %vm956, %v350, %v981
      %v1046 = vsel %vm956, %v352, %v984
      %v1047 = vsel %vm956, %v354, %v987
      %v1048 = vsel %vm956, %v356, %v990
      %v1049 = vsel %vm956, %v358, %v993
      %v1050 = vsel %vm956, %v360, %v996
      %v1051 = vsel %vm956, %v362, %v999
      %v1052 = vsel %vm956, %v364, %v1002
      %1053 = vst.msk [vmem:[%s333] sm:$0xff] %vm490, %v1037
      %1054 = vst.msk [vmem:[%s333 + $0x8] sm:$0xff] %vm490, %v959
      %1055 = vst.msk [vmem:[%s333 + $0x10] sm:$0xff] %vm490, %v1038
      %1056 = vst.msk [vmem:[%s333 + $0x18] sm:$0xff] %vm490, %v962
      %1057 = vst.msk [vmem:[%s333 + $0x20] sm:$0xff] %vm490, %v1039
      %1058 = vst.msk [vmem:[%s333 + $0x28] sm:$0xff] %vm490, %v965
      %1059 = vst.msk [vmem:[%s333 + $0x30] sm:$0xff] %vm490, %v1040
      %1060 = vst.msk [vmem:[%s333 + $0x38] sm:$0xff] %vm490, %v968
      %1061 = vst.msk [vmem:[%s333 + $0x40] sm:$0xff] %vm490, %v1041
      %1062 = vst.msk [vmem:[%s333 + $0x48] sm:$0xff] %vm490, %v971
      %1063 = vst.msk [vmem:[%s333 + $0x50] sm:$0xff] %vm490, %v1042
      %1064 = vst.msk [vmem:[%s333 + $0x58] sm:$0xff] %vm490, %v974
      %1065 = vst.msk [vmem:[%s333 + $0x60] sm:$0xff] %vm490, %v1043
      %1066 = vst.msk [vmem:[%s333 + $0x68] sm:$0xff] %vm490, %v977
      %1067 = vst.msk [vmem:[%s333 + $0x70] sm:$0xff] %vm490, %v1044
      %1068 = vst.msk [vmem:[%s333 + $0x78] sm:$0xff] %vm490, %v980
      %1069 = vst.msk [vmem:[%s333 + $0x80] sm:$0xff] %vm490, %v1045
      %1070 = vst.msk [vmem:[%s333 + $0x88] sm:$0xff] %vm490, %v983
      %1071 = vst.msk [vmem:[%s333 + $0x90] sm:$0xff] %vm490, %v1046
      %1072 = vst.msk [vmem:[%s333 + $0x98] sm:$0xff] %vm490, %v986
      %1073 = vst.msk [vmem:[%s333 + $0xa0] sm:$0xff] %vm490, %v1047
      %1074 = vst.msk [vmem:[%s333 + $0xa8] sm:$0xff] %vm490, %v989
      %1075 = vst.msk [vmem:[%s333 + $0xb0] sm:$0xff] %vm490, %v1048
      %1076 = vst.msk [vmem:[%s333 + $0xb8] sm:$0xff] %vm490, %v992
      %1077 = vst.msk [vmem:[%s333 + $0xc0] sm:$0xff] %vm490, %v1049
      %1078 = vst.msk [vmem:[%s333 + $0xc8] sm:$0xff] %vm490, %v995
      %1079 = vst.msk [vmem:[%s333 + $0xd0] sm:$0xff] %vm490, %v1050
      %1080 = vst.msk [vmem:[%s333 + $0xd8] sm:$0xff] %vm490, %v998
      %1081 = vst.msk [vmem:[%s333 + $0xe0] sm:$0xff] %vm490, %v1051
      %1082 = vst.msk [vmem:[%s333 + $0xe8] sm:$0xff] %vm490, %v1001
      %1083 = vst.msk [vmem:[%s333 + $0xf0] sm:$0xff] %vm490, %v1052
      %1084 = vst.msk [vmem:[%s333 + $0xf8] sm:$0xff] %vm490, %v1004
      %v1085 = vld [vmem:[%s301 + $0x2] sm:$0x1]
      %v1086 = vld [vmem:[%s301 + $0x3] sm:$0x1]
      %v1087 = vperm.slane %v1085, 0
      %v1088 = vmul.f32 %v1087, %v334
      %v1089 = vmul.f32 %v1087, %v335
      %v1090 = vmul.f32 %v1087, %v336
      %v1091 = vmul.f32 %v1087, %v337
      %v1092 = vmul.f32 %v1087, %v338
      %v1093 = vmul.f32 %v1087, %v339
      %v1094 = vmul.f32 %v1087, %v340
      %v1095 = vmul.f32 %v1087, %v341
      %v1096 = vmul.f32 %v1087, %v342
      %v1097 = vmul.f32 %v1087, %v343
      %v1098 = vmul.f32 %v1087, %v344
      %v1099 = vmul.f32 %v1087, %v345
      %v1100 = vmul.f32 %v1087, %v346
      %v1101 = vmul.f32 %v1087, %v347
      %v1102 = vmul.f32 %v1087, %v348
      %v1103 = vmul.f32 %v1087, %v349
      %v1104 = vmul.f32 %v1087, %v350
      %v1105 = vmul.f32 %v1087, %v351
      %v1106 = vmul.f32 %v1087, %v352
      %v1107 = vmul.f32 %v1087, %v353
      %v1108 = vmul.f32 %v1087, %v354
      %v1109 = vmul.f32 %v1087, %v355
      %v1110 = vmul.f32 %v1087, %v356
      %v1111 = vmul.f32 %v1087, %v357
      %v1112 = vmul.f32 %v1087, %v358
      %v1113 = vmul.f32 %v1087, %v359
      %v1114 = vmul.f32 %v1087, %v360
      %v1115 = vmul.f32 %v1087, %v361
      %v1116 = vmul.f32 %v1087, %v362
      %v1117 = vmul.f32 %v1087, %v363
      %v1118 = vmul.f32 %v1087, %v364
      %v1119 = vmul.f32 %v1087, %v365
      %v1120 = vperm.slane %v1086, 0
      %v1121 = vadd.f32 %v1088, %v1120
      %v1122 = vadd.f32 %v1089, %v1120
      %v1123 = vadd.f32 %v1090, %v1120
      %v1124 = vadd.f32 %v1091, %v1120
      %v1125 = vadd.f32 %v1092, %v1120
      %v1126 = vadd.f32 %v1093, %v1120
      %v1127 = vadd.f32 %v1094, %v1120
      %v1128 = vadd.f32 %v1095, %v1120
      %v1129 = vadd.f32 %v1096, %v1120
      %v1130 = vadd.f32 %v1097, %v1120
      %v1131 = vadd.f32 %v1098, %v1120
      %v1132 = vadd.f32 %v1099, %v1120
      %v1133 = vadd.f32 %v1100, %v1120
      %v1134 = vadd.f32 %v1101, %v1120
      %v1135 = vadd.f32 %v1102, %v1120
      %v1136 = vadd.f32 %v1103, %v1120
      %v1137 = vadd.f32 %v1104, %v1120
      %v1138 = vadd.f32 %v1105, %v1120
      %v1139 = vadd.f32 %v1106, %v1120
      %v1140 = vadd.f32 %v1107, %v1120
      %v1141 = vadd.f32 %v1108, %v1120
      %v1142 = vadd.f32 %v1109, %v1120
      %v1143 = vadd.f32 %v1110, %v1120
      %v1144 = vadd.f32 %v1111, %v1120
      %v1145 = vadd.f32 %v1112, %v1120
      %v1146 = vadd.f32 %v1113, %v1120
      %v1147 = vadd.f32 %v1114, %v1120
      %v1148 = vadd.f32 %v1115, %v1120
      %v1149 = vadd.f32 %v1116, %v1120
      %v1150 = vadd.f32 %v1117, %v1120
      %v1151 = vadd.f32 %v1118, %v1120
      %v1152 = vadd.f32 %v1119, %v1120
      %v1153 = vrot.slane %v334, 7
      %v1154 = vrot.slane %v335, 7
      %v1155 = vsel %vm956, %v1153, %v1154
      %v1156 = vrot.slane %v336, 7
      %v1157 = vrot.slane %v337, 7
      %v1158 = vsel %vm956, %v1156, %v1157
      %v1159 = vrot.slane %v338, 7
      %v1160 = vrot.slane %v339, 7
      %v1161 = vsel %vm956, %v1159, %v1160
      %v1162 = vrot.slane %v340, 7
      %v1163 = vrot.slane %v341, 7
      %v1164 = vsel %vm956, %v1162, %v1163
      %v1165 = vrot.slane %v342, 7
      %v1166 = vrot.slane %v343, 7
      %v1167 = vsel %vm956, %v1165, %v1166
      %v1168 = vrot.slane %v344, 7
      %v1169 = vrot.slane %v345, 7
      %v1170 = vsel %vm956, %v1168, %v1169
      %v1171 = vrot.slane %v346, 7
      %v1172 = vrot.slane %v347, 7
      %v1173 = vsel %vm956, %v1171, %v1172
      %v1174 = vrot.slane %v348, 7
      %v1175 = vrot.slane %v349, 7
      %v1176 = vsel %vm956, %v1174, %v1175
      %v1177 = vrot.slane %v350, 7
      %v1178 = vrot.slane %v351, 7
      %v1179 = vsel %vm956, %v1177, %v1178
      %v1180 = vrot.slane %v352, 7
      %v1181 = vrot.slane %v353, 7
      %v1182 = vsel %vm956, %v1180, %v1181
      %v1183 = vrot.slane %v354, 7
      %v1184 = vrot.slane %v355, 7
      %v1185 = vsel %vm956, %v1183, %v1184
      %v1186 = vrot.slane %v356, 7
      %v1187 = vrot.slane %v357, 7
      %v1188 = vsel %vm956, %v1186, %v1187
      %v1189 = vrot.slane %v358, 7
      %v1190 = vrot.slane %v359, 7
      %v1191 = vsel %vm956, %v1189, %v1190
      %v1192 = vrot.slane %v360, 7
      %v1193 = vrot.slane %v361, 7
      %v1194 = vsel %vm956, %v1192, %v1193
      %v1195 = vrot.slane %v362, 7
      %v1196 = vrot.slane %v363, 7
      %v1197 = vsel %vm956, %v1195, %v1196
      %v1198 = vrot.slane %v364, 7
      %v1199 = vrot.slane %v365, 7
      %v1200 = vsel %vm956, %v1198, %v1199
      %v1233 = vadd.f32 %v1121, %v1153
      %v1234 = vadd.f32 %v1122, %v1155
      %v1235 = vadd.f32 %v1123, %v1156
      %v1236 = vadd.f32 %v1124, %v1158
      %v1237 = vadd.f32 %v1125, %v1159
      %v1238 = vadd.f32 %v1126, %v1161
      %v1239 = vadd.f32 %v1127, %v1162
      %v1240 = vadd.f32 %v1128, %v1164
      %v1241 = vadd.f32 %v1129, %v1165
      %v1242 = vadd.f32 %v1130, %v1167
      %v1243 = vadd.f32 %v1131, %v1168
      %v1244 = vadd.f32 %v1132, %v1170
      %v1245 = vadd.f32 %v1133, %v1171
      %v1246 = vadd.f32 %v1134, %v1173
      %v1247 = vadd.f32 %v1135, %v1174
      %v1248 = vadd.f32 %v1136, %v1176
      %v1249 = vadd.f32 %v1137, %v1177
      %v1250 = vadd.f32 %v1138, %v1179
      %v1251 = vadd.f32 %v1139, %v1180
      %v1252 = vadd.f32 %v1140, %v1182
      %v1253 = vadd.f32 %v1141, %v1183
      %v1254 = vadd.f32 %v1142, %v1185
      %v1255 = vadd.f32 %v1143, %v1186
      %v1256 = vadd.f32 %v1144, %v1188
      %v1257 = vadd.f32 %v1145, %v1189
      %v1258 = vadd.f32 %v1146, %v1191
      %v1259 = vadd.f32 %v1147, %v1192
      %v1260 = vadd.f32 %v1148, %v1194
      %v1261 = vadd.f32 %v1149, %v1195
      %v1262 = vadd.f32 %v1150, %v1197
      %v1263 = vadd.f32 %v1151, %v1198
      %v1264 = vadd.f32 %v1152, %v1200
      %v1265 = vmax.f32 %v1233, 0.0
      %v1266 = vmax.f32 %v1234, 0.0
      %v1267 = vmax.f32 %v1235, 0.0
      %v1268 = vmax.f32 %v1236, 0.0
      %v1269 = vmax.f32 %v1237, 0.0
      %v1270 = vmax.f32 %v1238, 0.0
      %v1271 = vmax.f32 %v1239, 0.0
      %v1272 = vmax.f32 %v1240, 0.0
      %v1273 = vmax.f32 %v1241, 0.0
      %v1274 = vmax.f32 %v1242, 0.0
      %v1275 = vmax.f32 %v1243, 0.0
      %v1276 = vmax.f32 %v1244, 0.0
      %v1277 = vmax.f32 %v1245, 0.0
      %v1278 = vmax.f32 %v1246, 0.0
      %v1279 = vmax.f32 %v1247, 0.0
      %v1280 = vmax.f32 %v1248, 0.0
      %v1281 = vmax.f32 %v1249, 0.0
      %v1282 = vmax.f32 %v1250, 0.0
      %v1283 = vmax.f32 %v1251, 0.0
      %v1284 = vmax.f32 %v1252, 0.0
      %v1285 = vmax.f32 %v1253, 0.0
      %v1286 = vmax.f32 %v1254, 0.0
      %v1287 = vmax.f32 %v1255, 0.0
      %v1288 = vmax.f32 %v1256, 0.0
      %v1289 = vmax.f32 %v1257, 0.0
      %v1290 = vmax.f32 %v1258, 0.0
      %v1291 = vmax.f32 %v1259, 0.0
      %v1292 = vmax.f32 %v1260, 0.0
      %v1293 = vmax.f32 %v1261, 0.0
      %v1294 = vmax.f32 %v1262, 0.0
      %v1295 = vmax.f32 %v1263, 0.0
      %v1296 = vmax.f32 %v1264, 0.0
      %v1329 = vrot.slane %v1265, 1
      %v1330 = vrot.slane %v1266, 1
      %v1331 = vsel %vm779, %v1329, %v1330
      %v1332 = vrot.slane %v1267, 1
      %v1333 = vrot.slane %v1268, 1
      %v1334 = vsel %vm779, %v1332, %v1333
      %v1335 = vrot.slane %v1269, 1
      %v1336 = vrot.slane %v1270, 1
      %v1337 = vsel %vm779, %v1335, %v1336
      %v1338 = vrot.slane %v1271, 1
      %v1339 = vrot.slane %v1272, 1
      %v1340 = vsel %vm779, %v1338, %v1339
      %v1341 = vrot.slane %v1273, 1
      %v1342 = vrot.slane %v1274, 1
      %v1343 = vsel %vm779, %v1341, %v1342
      %v1344 = vrot.slane %v1275, 1
      %v1345 = vrot.slane %v1276, 1
      %v1346 = vsel %vm779, %v1344, %v1345
      %v1347 = vrot.slane %v1277, 1
      %v1348 = vrot.slane %v1278, 1
      %v1349 = vsel %vm779, %v1347, %v1348
      %v1350 = vrot.slane %v1279, 1
      %v1351 = vrot.slane %v1280, 1
      %v1352 = vsel %vm779, %v1350, %v1351
      %v1353 = vrot.slane %v1281, 1
      %v1354 = vrot.slane %v1282, 1
      %v1355 = vsel %vm779, %v1353, %v1354
      %v1356 = vrot.slane %v1283, 1
      %v1357 = vrot.slane %v1284, 1
      %v1358 = vsel %vm779, %v1356, %v1357
      %v1359 = vrot.slane %v1285, 1
      %v1360 = vrot.slane %v1286, 1
      %v1361 = vsel %vm779, %v1359, %v1360
      %v1362 = vrot.slane %v1287, 1
      %v1363 = vrot.slane %v1288, 1
      %v1364 = vsel %vm779, %v1362, %v1363
      %v1365 = vrot.slane %v1289, 1
      %v1366 = vrot.slane %v1290, 1
      %v1367 = vsel %vm779, %v1365, %v1366
      %v1368 = vrot.slane %v1291, 1
      %v1369 = vrot.slane %v1292, 1
      %v1370 = vsel %vm779, %v1368, %v1369
      %v1371 = vrot.slane %v1293, 1
      %v1372 = vrot.slane %v1294, 1
      %v1373 = vsel %vm779, %v1371, %v1372
      %v1374 = vrot.slane %v1295, 1
      %v1375 = vrot.slane %v1296, 1
      %v1376 = vsel %vm779, %v1374, %v1375
      %v1409 = vsel %vm779, %v1330, %v335
      %v1410 = vsel %vm779, %v1333, %v337
      %v1411 = vsel %vm779, %v1336, %v339
      %v1412 = vsel %vm779, %v1339, %v341
      %v1413 = vsel %vm779, %v1342, %v343
      %v1414 = vsel %vm779, %v1345, %v345
      %v1415 = vsel %vm779, %v1348, %v347
      %v1416 = vsel %vm779, %v1351, %v349
      %v1417 = vsel %vm779, %v1354, %v351
      %v1418 = vsel %vm779, %v1357, %v353
      %v1419 = vsel %vm779, %v1360, %v355
      %v1420 = vsel %vm779, %v1363, %v357
      %v1421 = vsel %vm779, %v1366, %v359
      %v1422 = vsel %vm779, %v1369, %v361
      %v1423 = vsel %vm779, %v1372, %v363
      %v1424 = vsel %vm779, %v1375, %v365
      %1425 = vst.msk [vmem:[%s317] sm:$0xff] %vm490, %v1331
      %1426 = vst.msk [vmem:[%s317 + $0x8] sm:$0xff] %vm490, %v1409
      %1427 = vst.msk [vmem:[%s317 + $0x10] sm:$0xff] %vm490, %v1334
      %1428 = vst.msk [vmem:[%s317 + $0x18] sm:$0xff] %vm490, %v1410
      %1429 = vst.msk [vmem:[%s317 + $0x20] sm:$0xff] %vm490, %v1337
      %1430 = vst.msk [vmem:[%s317 + $0x28] sm:$0xff] %vm490, %v1411
      %1431 = vst.msk [vmem:[%s317 + $0x30] sm:$0xff] %vm490, %v1340
      %1432 = vst.msk [vmem:[%s317 + $0x38] sm:$0xff] %vm490, %v1412
      %1433 = vst.msk [vmem:[%s317 + $0x40] sm:$0xff] %vm490, %v1343
      %1434 = vst.msk [vmem:[%s317 + $0x48] sm:$0xff] %vm490, %v1413
      %1435 = vst.msk [vmem:[%s317 + $0x50] sm:$0xff] %vm490, %v1346
      %1436 = vst.msk [vmem:[%s317 + $0x58] sm:$0xff] %vm490, %v1414
      %1437 = vst.msk [vmem:[%s317 + $0x60] sm:$0xff] %vm490, %v1349
      %1438 = vst.msk [vmem:[%s317 + $0x68] sm:$0xff] %vm490, %v1415
      %1439 = vst.msk [vmem:[%s317 + $0x70] sm:$0xff] %vm490, %v1352
      %1440 = vst.msk [vmem:[%s317 + $0x78] sm:$0xff] %vm490, %v1416
      %1441 = vst.msk [vmem:[%s317 + $0x80] sm:$0xff] %vm490, %v1355
      %1442 = vst.msk [vmem:[%s317 + $0x88] sm:$0xff] %vm490, %v1417
      %1443 = vst.msk [vmem:[%s317 + $0x90] sm:$0xff] %vm490, %v1358
      %1444 = vst.msk [vmem:[%s317 + $0x98] sm:$0xff] %vm490, %v1418
      %1445 = vst.msk [vmem:[%s317 + $0xa0] sm:$0xff] %vm490, %v1361
      %1446 = vst.msk [vmem:[%s317 + $0xa8] sm:$0xff] %vm490, %v1419
      %1447 = vst.msk [vmem:[%s317 + $0xb0] sm:$0xff] %vm490, %v1364
      %1448 = vst.msk [vmem:[%s317 + $0xb8] sm:$0xff] %vm490, %v1420
      %1449 = vst.msk [vmem:[%s317 + $0xc0] sm:$0xff] %vm490, %v1367
      %1450 = vst.msk [vmem:[%s317 + $0xc8] sm:$0xff] %vm490, %v1421
      %1451 = vst.msk [vmem:[%s317 + $0xd0] sm:$0xff] %vm490, %v1370
      %1452 = vst.msk [vmem:[%s317 + $0xd8] sm:$0xff] %vm490, %v1422
      %1453 = vst.msk [vmem:[%s317 + $0xe0] sm:$0xff] %vm490, %v1373
      %1454 = vst.msk [vmem:[%s317 + $0xe8] sm:$0xff] %vm490, %v1423
      %1455 = vst.msk [vmem:[%s317 + $0xf0] sm:$0xff] %vm490, %v1376
      %1456 = vst.msk [vmem:[%s317 + $0xf8] sm:$0xff] %vm490, %v1424
      %p1457 = scmp.lt.s32.totalorder %s21, 1
      %s1458 = scalar_select %p1457, %s21, 1
      %p1459 = scmp.lt.s32.totalorder %s22, 0
      %s1460 = scalar_select %p1459, %s22, 0
      %s1461 = smul.addr %s1458, 32
      %s1462 = sadd.s32 %s1460, %s1461
      %s1463 = smul.addr %s1462, 8
      %s1464 = scalar_lea.vmem %s2, %s1463
      %p1465 = scmp.lt.s32.totalorder %s21, 1
      %s1466 = scalar_select %p1465, %s21, 1
      %p1467 = scmp.lt.s32.totalorder %s22, 0
      %s1468 = scalar_select %p1467, %s22, 0
      %s1469 = smul.addr %s1466, 32
      %s1470 = sadd.s32 %s1468, %s1469
      %s1471 = smul.addr %s1470, 8
      %s1472 = scalar_lea.vmem %s3, %s1471
      %p1473 = scmp.lt.s32.totalorder %s21, 1
      %s1474 = scalar_select %p1473, %s21, 1
      %p1475 = scmp.lt.s32.totalorder %s22, 0
      %s1476 = scalar_select %p1475, %s22, 0
      %s1477 = smul.addr %s1474, 32
      %s1478 = sadd.s32 %s1476, %s1477
      %s1479 = smul.addr %s1478, 8
      %s1480 = scalar_lea.vmem %s4, %s1479
      %p1481 = scmp.lt.s32.totalorder %s21, 1
      %s1482 = scalar_select %p1481, %s21, 1
      %p1483 = scmp.lt.s32.totalorder %s22, 0
      %s1484 = scalar_select %p1483, %s22, 0
      %s1485 = smul.addr %s1482, 32
      %s1486 = sadd.s32 %s1484, %s1485
      %s1487 = smul.addr %s1486, 8
      %s1488 = scalar_lea.vmem %s5, %s1487
      // Predicated region
      $region29: #{tpu_custom_call.1} parent=27 // pred_check
        %p1489 = pneg %p103
      $region30: #{tpu_custom_call.1} parent=27 // pred_check_branch
        %1491 = sbr.rel (%p1489) target = $region32
      $region31: #{tpu_custom_call.1} parent=27 // pred_region
        _
      $region32: #{tpu_custom_call.1} parent=27 // pred_fallthru
        _
      // Predicated region
      $region33: #{tpu_custom_call.1} parent=27 // pred_check
        %p1492 = pneg %p131
      $region34: #{tpu_custom_call.1} parent=27 // pred_check_branch
        %1494 = sbr.rel (%p1492) target = $region36
      $region35: #{tpu_custom_call.1} parent=27 // pred_region
        _
      $region36: #{tpu_custom_call.1} parent=27 // pred_fallthru
        _
      // Predicated region
      $region37: #{tpu_custom_call.1} parent=27 // pred_check
        %p1495 = pneg %p159
      $region38: #{tpu_custom_call.1} parent=27 // pred_check_branch
        %1497 = sbr.rel (%p1495) target = $region40
      $region39: #{tpu_custom_call.1} parent=27 // pred_region
        _
      $region40: #{tpu_custom_call.1} parent=27 // pred_fallthru
        _
      // Predicated region
      $region41: #{tpu_custom_call.1} parent=27 // pred_check
        %p1498 = pneg %p187
      $region42: #{tpu_custom_call.1} parent=27 // pred_check_branch
        %1500 = sbr.rel (%p1498) target = $region44
      $region43: #{tpu_custom_call.1} parent=27 // pred_region
        _
      $region44: #{tpu_custom_call.1} parent=27 // pred_fallthru
        _
    $region28: #{tpu_custom_call.1} parent=5 // pred_fallthru
      _
    %p1501 = scmp.le.s32.totalorder 2, %s12
    // Predicated region
    $region45: #{tpu_custom_call.1} parent=5 // pred_check
      %p1502 = pneg %p1501
    $region46: #{tpu_custom_call.1} parent=5 // pred_check_branch
      %1504 = sbr.rel (%p1502) target = $region48
    $region47: #{tpu_custom_call.1} parent=5 // pred_region
      %s1505 = ssub.s32 %s12, 2
      // Predicated region
      $region49: #{tpu_custom_call.1} parent=47 // pred_check
        %p1506 = pneg %p109
      $region50: #{tpu_custom_call.1} parent=47 // pred_check_branch
        %1508 = sbr.rel (%p1506) target = $region52
      $region51: #{tpu_custom_call.1} parent=47 // pred_region
        %p1509 = scmp.lt.s32.totalorder %s23, 1
        %s1510 = scalar_select %p1509, %s23, 1
        %p1511 = scmp.lt.s32.totalorder %s24, 0
        %s1512 = scalar_select %p1511, %s24, 0
        %s1513 = smul.addr %s1510, 32
        %s1514 = sadd.s32 %s1512, %s1513
        %s1515 = smul.addr %s1514, 8
        %s1516 = scalar_lea.vmem %s2, %s1515
      $region52: #{tpu_custom_call.1} parent=47 // pred_fallthru
        _
      // Predicated region
      $region53: #{tpu_custom_call.1} parent=47 // pred_check
        %p1517 = pneg %p137
      $region54: #{tpu_custom_call.1} parent=47 // pred_check_branch
        %1519 = sbr.rel (%p1517) target = $region56
      $region55: #{tpu_custom_call.1} parent=47 // pred_region
        %p1520 = scmp.lt.s32.totalorder %s23, 1
        %s1521 = scalar_select %p1520, %s23, 1
        %p1522 = scmp.lt.s32.totalorder %s24, 0
        %s1523 = scalar_select %p1522, %s24, 0
        %s1524 = smul.addr %s1521, 32
        %s1525 = sadd.s32 %s1523, %s1524
        %s1526 = smul.addr %s1525, 8
        %s1527 = scalar_lea.vmem %s3, %s1526
      $region56: #{tpu_custom_call.1} parent=47 // pred_fallthru
        _
      // Predicated region
      $region57: #{tpu_custom_call.1} parent=47 // pred_check
        %p1528 = pneg %p165
      $region58: #{tpu_custom_call.1} parent=47 // pred_check_branch
        %1530 = sbr.rel (%p1528) target = $region60
      $region59: #{tpu_custom_call.1} parent=47 // pred_region
        %p1531 = scmp.lt.s32.totalorder %s23, 1
        %s1532 = scalar_select %p1531, %s23, 1
        %p1533 = scmp.lt.s32.totalorder %s24, 0
        %s1534 = scalar_select %p1533, %s24, 0
        %s1535 = smul.addr %s1532, 32
        %s1536 = sadd.s32 %s1534, %s1535
        %s1537 = smul.addr %s1536, 8
        %s1538 = scalar_lea.vmem %s4, %s1537
      $region60: #{tpu_custom_call.1} parent=47 // pred_fallthru
        _
      // Predicated region
      $region61: #{tpu_custom_call.1} parent=47 // pred_check
        %p1539 = pneg %p193
      $region62: #{tpu_custom_call.1} parent=47 // pred_check_branch
        %1541 = sbr.rel (%p1539) target = $region64
      $region63: #{tpu_custom_call.1} parent=47 // pred_region
        %p1542 = scmp.lt.s32.totalorder %s23, 1
        %s1543 = scalar_select %p1542, %s23, 1
        %p1544 = scmp.lt.s32.totalorder %s24, 0
        %s1545 = scalar_select %p1544, %s24, 0
        %s1546 = smul.addr %s1543, 32
        %s1547 = sadd.s32 %s1545, %s1546
        %s1548 = smul.addr %s1547, 8
        %s1549 = scalar_lea.vmem %s5, %s1548
      $region64: #{tpu_custom_call.1} parent=47 // pred_fallthru
        _
    $region48: #{tpu_custom_call.1} parent=5 // pred_fallthru
      _
  $region6: #{tpu_custom_call.1} parent=0 // loop_footer
    %s16 = sadd.s32 1, %s12
  $region7: #{tpu_custom_call.1} parent=0 // loop_footer_branch
    %11 = sbr.rel target = $region3
  $region8: #{tpu_custom_call.1} parent=0 // loop_exit
    _

</llo_original>
